<compile_context>
chip_gen: v7x
topology: tpu7x:2x2x1
jax: 0.10.0
libtpu: 0.0.40
codegen_flags: <defaults>
</compile_context>

<pallas_src>
import jax
import jax.numpy as jnp
from jax.experimental import pallas as pl
from jax.experimental.pallas import tpu as pltpu


def _agcrn_cell_kernel(xs_ref, s_ref, sbd_ref, wgz_ref, wgr_ref, wux_ref, wus_ref,
                       bz_ref, br_ref, bu_ref, eexp_ref, fold_ref, out_ref):
    """One batch block: two VWGCN graph convolutions + GRU-style gating.

    Row layout everywhere is (local_batch, node) -> R = bb * N rows.
    """
    R = xs_ref.shape[1]           # rows handled by this block (bb * N)
    K = wgz_ref.shape[0]          # number of stacked supports
    Ci = wux_ref.shape[1]         # raw input channels (dim_in)
    cdt = xs_ref.dtype            # compute dtype for MXU operands (f32 or bf16)

    xs = xs_ref[0]                # (R, Ci + H)   [x || state], compute dtype
    s = s_ref[0]                  # (R, H)        state, f32
    e_exp = eexp_ref[...]         # (R, D*H)      e[n, d] replicated across H lanes
    fold = fold_ref[...]          # (D*H, H)      D stacked identities (sum over d)

    def tree_sum(terms):
        # balanced reduction -> no serial accumulator dependency chain
        while len(terms) > 1:
            nxt = [terms[i] + terms[i + 1] for i in range(0, len(terms) - 1, 2)]
            if len(terms) % 2:
                nxt.append(terms[-1])
            terms = nxt
        return terms[0]

    def node_mix(t, bias):
        # Per-node embedding contraction, kept on the MXU:
        #   out[row, o] = sum_d e[row, d] * t[row, d*H + o] + bias[row, o]
        return jnp.dot(t * e_exp, fold, preferred_element_type=jnp.float32) + bias

    # ---- gate VWGCN: one matmul applies all K supports to all rows ----------
    sxs = jnp.dot(sbd_ref[...], xs,
                  preferred_element_type=jnp.float32).astype(cdt)      # (K*R, Ci+H)

    tz, tr = [], []
    for k in range(K):            # K is small & static -> unrolled, independent partials
        xg_k = sxs[k * R:(k + 1) * R, :]                               # (R, Ci+H)
        tz.append(jnp.dot(xg_k, wgz_ref[k], preferred_element_type=jnp.float32))
        tr.append(jnp.dot(xg_k, wgr_ref[k], preferred_element_type=jnp.float32))
    z = jax.nn.sigmoid(node_mix(tree_sum(tz), bz_ref[...]))            # (R, H)
    r = jax.nn.sigmoid(node_mix(tree_sum(tr), br_ref[...]))            # (R, H)

    # ---- update VWGCN on [x || z*state]; reuse the x part of the gate conv --
    zs = (z * s).astype(cdt)
    szs = jnp.dot(sbd_ref[...], zs,
                  preferred_element_type=jnp.float32).astype(cdt)      # (K*R, H)
    tu = []
    for k in range(K):
        tu.append(jnp.dot(sxs[k * R:(k + 1) * R, :Ci], wux_ref[k],
                          preferred_element_type=jnp.float32))
        tu.append(jnp.dot(szs[k * R:(k + 1) * R, :], wus_ref[k],
                          preferred_element_type=jnp.float32))
    hc = jnp.tanh(node_mix(tree_sum(tu), bu_ref[...]))                 # (R, H)

    out_ref[0] = (r * s + (1.0 - r) * hc).astype(out_ref.dtype)


def agcrn_cell_pallas(x, state, supports, weights_pool_gate, bias_pool_gate,
                      weights_pool_update, bias_pool_update, node_embeddings,
                      *, num_blocks=1, compute_dtype=jnp.float32):
    """x: (B,N,Ci), state: (B,N,H), supports: (K,N,N),
       weights_pool_gate: (D,K,Ci+H,2H), bias_pool_gate: (D,2H),
       weights_pool_update: (D,K,Ci+H,H), bias_pool_update: (D,H),
       node_embeddings: (N,D)  ->  (B,N,H)"""
    B, N, Ci = x.shape
    H = state.shape[-1]
    K = supports.shape[0]
    D = node_embeddings.shape[-1]
    C = Ci + H
    assert B % num_blocks == 0, "batch must divide evenly into grid blocks"
    bb = B // num_blocks
    R = bb * N
    f32 = jnp.float32

    # --- rows layout (num_blocks, bb*N, channels): batch folded into matmul M dim ---
    xs = jnp.concatenate([x, state], axis=-1).reshape(num_blocks, R, C).astype(compute_dtype)
    s_rows = state.reshape(num_blocks, R, H).astype(f32)

    # --- K supports stacked + block-diagonal over the bb local batch rows ----
    #     -> the whole graph conv is ONE (K*R, R) @ (R, C) matmul per input.
    s_bd = jnp.einsum('ab,knm->kanbm', jnp.eye(bb, dtype=f32),
                      supports.astype(f32)).reshape(K * R, R).astype(compute_dtype)

    # --- VWGCN weights stay factorized: flatten pool to (K, C_in, D*C_out) ---
    def flat(wp):  # (D, K, Cin, Cout) -> (K, Cin, D*Cout), column index = d*Cout + o
        Dp, Kp, Cin, Cout = wp.shape
        return jnp.transpose(wp, (1, 2, 0, 3)).reshape(Kp, Cin, Dp * Cout).astype(compute_dtype)

    wgz = flat(weights_pool_gate[..., :H])          # z half        (K, C,  D*H)
    wgr = flat(weights_pool_gate[..., H:])          # r half        (K, C,  D*H)
    wux = flat(weights_pool_update[:, :, :Ci, :])   # x channels    (K, Ci, D*H)
    wus = flat(weights_pool_update[:, :, Ci:, :])   # state chans   (K, H,  D*H)

    # --- per-node biases + embedding-fold helpers (constant across the grid) ---
    bias_gate = node_embeddings @ bias_pool_gate                     # (N, 2H)
    bz = jnp.tile(bias_gate[:, :H], (bb, 1)).astype(f32)             # (R, H)
    br = jnp.tile(bias_gate[:, H:], (bb, 1)).astype(f32)             # (R, H)
    bu = jnp.tile(node_embeddings @ bias_pool_update, (bb, 1)).astype(f32)   # (R, H)
    e_exp = jnp.tile(jnp.repeat(node_embeddings.astype(f32), H, axis=1), (bb, 1))  # (R, D*H)
    fold = jnp.tile(jnp.eye(H, dtype=f32), (D, 1))                   # (D*H, H)

    const2 = lambda a: pl.BlockSpec(a.shape, lambda g: (0, 0))
    const3 = lambda a: pl.BlockSpec(a.shape, lambda g: (0, 0, 0))

    out = pl.pallas_call(
        _agcrn_cell_kernel,
        out_shape=jax.ShapeDtypeStruct((num_blocks, R, H), jnp.float32),
        grid_spec=pltpu.PrefetchScalarGridSpec(
            num_scalar_prefetch=0,
            grid=(num_blocks,),
            in_specs=[
                pl.BlockSpec((1, R, C), lambda g: (g, 0, 0)),   # [x || state] rows
                pl.BlockSpec((1, R, H), lambda g: (g, 0, 0)),   # state rows
                const2(s_bd),
                const3(wgz), const3(wgr), const3(wux), const3(wus),
                const2(bz), const2(br), const2(bu),
                const2(e_exp), const2(fold),
            ],
            out_specs=pl.BlockSpec((1, R, H), lambda g: (g, 0, 0)),
        ),
        # num_blocks=2 keeps both v7x TensorCores busy; num_blocks=1 gives the
        # widest matmuls on single-TC v5e/v6e.  Set vmem_limit_bytes here if N
        # is scaled up to real PEMS graph sizes.
        compiler_params=pltpu.CompilerParams(dimension_semantics=("parallel",)),
    )(xs, s_rows, s_bd, wgz, wgr, wux, wus, bz, br, bu, e_exp, fold)

    return out.reshape(B, N, H)


# ------------------------- plain-JAX glue / setup -------------------------

def build_supports(node_embeddings, lap, cheb_k, add_apt):
    """Support stack: [I, L, Chebyshev..., (adaptive adjacency)] -> (K, N, N)."""
    n = node_embeddings.shape[0]
    support_set = [jnp.eye(n, dtype=jnp.float32), lap]
    for _ in range(2, cheb_k):
        support_set.append(2.0 * lap @ support_set[-1] - support_set[-2])
    if add_apt:
        apt = jax.nn.softmax(jax.nn.relu(node_embeddings @ node_embeddings.T), axis=1)
        support_set.append(apt)
    return jnp.stack(support_set, axis=0)


def make_vwgcn_weights(node_embeddings, weights_pool, bias_pool):
    """(Reference only) weights_pool: (D, K, Ci, Co), bias_pool: (D, Co) ->
       per-node weights (K, N, Ci, Co), bias (N, Co)."""
    w = jnp.einsum('nd,dkio->nkio', node_embeddings, weights_pool)  # (N,K,Ci,Co)
    w = jnp.transpose(w, (1, 0, 2, 3))                              # (K,N,Ci,Co)
    b = node_embeddings @ bias_pool                                 # (N,Co)
    return w, b


def agcrn_cell_reference(x, state, supports, w_gate, b_gate, w_update, b_update,
                         dim_in, hidden_dim):
    """Pure-JAX reference mirroring the PyTorch forward."""
    def vwgcn(inp, w, b):
        x_g = jnp.einsum('knm,bmc->bknc', supports, inp)       # (B,K,N,C)
        x_g = jnp.transpose(x_g, (0, 2, 1, 3))                 # (B,N,K,C)
        w_nkio = jnp.transpose(w, (1, 0, 2, 3))                # (N,K,Ci,Co)
        return jnp.einsum('bnki,nkio->bno', x_g, w_nkio) + b

    input_and_state = jnp.concatenate([x, state], axis=-1)
    z_r = jax.nn.sigmoid(vwgcn(input_and_state, w_gate, b_gate))
    z, r = z_r[..., :hidden_dim], z_r[..., hidden_dim:]
    candidate = jnp.concatenate([x, z * state], axis=-1)
    hc = jnp.tanh(vwgcn(candidate, w_update, b_update))
    return r * state + (1.0 - r) * hc


if __name__ == "__main__":
    # AGCRNCell(node_num=16, dim_in=4, dim_out=32, cheb_k=3, embed_dim=8,
    #           dropout=0, add_apt=True)
    B, N, dim_in, hidden, cheb_k, embed_dim = 2, 16, 4, 32, 3, 8
    add_apt = True
    K = cheb_k + 1 if add_apt else cheb_k
    c_in = dim_in + hidden

    key = jax.random.PRNGKey(0)
    keys = jax.random.split(key, 8)
    x = jax.random.normal(keys[0], (B, N, dim_in), jnp.float32)
    state = jax.random.normal(keys[1], (B, N, hidden), jnp.float32)
    node_embeddings = jax.random.normal(keys[2], (N, embed_dim), jnp.float32)

    # deterministic synthetic graph Laplacian-like matrix (symmetric, row-normalized)
    a = jax.random.uniform(keys[3], (N, N), jnp.float32)
    a = 0.5 * (a + a.T)
    lap = a / jnp.sum(a, axis=1, keepdims=True)

    # deterministic parameter init (shapes follow VWGCN.__init__)
    scale = 0.1
    wp_gate = scale * jax.random.normal(keys[4], (embed_dim, K, c_in, 2 * hidden), jnp.float32)
    bp_gate = scale * jax.random.normal(keys[5], (embed_dim, 2 * hidden), jnp.float32)
    wp_upd = scale * jax.random.normal(keys[6], (embed_dim, K, c_in, hidden), jnp.float32)
    bp_upd = scale * jax.random.normal(keys[7], (embed_dim, hidden), jnp.float32)

    # glue: support stack (dropout=0 in this config -> no dropout on embeddings)
    supports = build_supports(node_embeddings, lap, cheb_k, add_apt)

    # f32 path: full batch folded into one grid step (widest matmuls; v5e/v6e).
    h = agcrn_cell_pallas(x, state, supports, wp_gate, bp_gate, wp_upd, bp_upd,
                          node_embeddings, num_blocks=1)
    h = jax.block_until_ready(h)

    # reference materializes per-node weights; the kernel keeps them factorized
    w_gate, b_gate = make_vwgcn_weights(node_embeddings, wp_gate, bp_gate)
    w_update, b_update = make_vwgcn_weights(node_embeddings, wp_upd, bp_upd)
    h_ref = agcrn_cell_reference(x, state, supports, w_gate, b_gate,
                                 w_update, b_update, dim_in, hidden)
    assert h.shape == (B, N, hidden)
    assert jnp.allclose(h, h_ref, atol=1e-3, rtol=1e-3), "f32 kernel mismatch vs reference"

    # 2-way batch split (fills both v7x TensorCores) + bf16 MXU operands.
    h_bf16 = agcrn_cell_pallas(x, state, supports, wp_gate, bp_gate, wp_upd, bp_upd,
                               node_embeddings, num_blocks=2,
                               compute_dtype=jnp.bfloat16)
    h_bf16 = jax.block_until_ready(h_bf16)
    assert jnp.allclose(h_bf16, h_ref, atol=5e-2, rtol=5e-2), "bf16 kernel mismatch vs reference"

    print("KERNEL_OK")
</pallas_src>

<mosaic_0001>
module attributes {stable_mosaic.version = 11 : i64} {
  func.func @_agcrn_cell_kernel(%arg0: i32, %arg1: memref<1x32x36xf32, #tpu.memory_space<vmem>>, %arg2: memref<1x32x32xf32, #tpu.memory_space<vmem>>, %arg3: memref<128x32xf32, #tpu.memory_space<vmem>>, %arg4: memref<4x36x256xf32, #tpu.memory_space<vmem>>, %arg5: memref<4x36x256xf32, #tpu.memory_space<vmem>>, %arg6: memref<4x4x256xf32, #tpu.memory_space<vmem>>, %arg7: memref<4x32x256xf32, #tpu.memory_space<vmem>>, %arg8: memref<32x32xf32, #tpu.memory_space<vmem>>, %arg9: memref<32x32xf32, #tpu.memory_space<vmem>>, %arg10: memref<32x32xf32, #tpu.memory_space<vmem>>, %arg11: memref<32x256xf32, #tpu.memory_space<vmem>>, %arg12: memref<256x32xf32, #tpu.memory_space<vmem>>, %arg13: memref<1x32x32xf32, #tpu.memory_space<vmem>>) attributes {dimension_semantics = [#tpu.dimension_semantics<parallel>], iteration_bounds = array<i64: 1>, scalar_prefetch = 0 : i64, scratch_operands = 0 : i64, tpu.core_type = #tpu.core_type<tc>, window_params = [{transform_indices = @transform_0, window_bounds = array<i64: 1, 32, 36>}, {transform_indices = @transform_1, window_bounds = array<i64: 1, 32, 32>}, {pipeline_mode = #tpu.pipeline_mode<synchronous>, transform_indices = @transform_2, window_bounds = array<i64: 128, 32>}, {pipeline_mode = #tpu.pipeline_mode<synchronous>, transform_indices = @transform_3, window_bounds = array<i64: 4, 36, 256>}, {pipeline_mode = #tpu.pipeline_mode<synchronous>, transform_indices = @transform_4, window_bounds = array<i64: 4, 36, 256>}, {pipeline_mode = #tpu.pipeline_mode<synchronous>, transform_indices = @transform_5, window_bounds = array<i64: 4, 4, 256>}, {pipeline_mode = #tpu.pipeline_mode<synchronous>, transform_indices = @transform_6, window_bounds = array<i64: 4, 32, 256>}, {pipeline_mode = #tpu.pipeline_mode<synchronous>, transform_indices = @transform_7, window_bounds = array<i64: 32, 32>}, {pipeline_mode = #tpu.pipeline_mode<synchronous>, transform_indices = @transform_8, window_bounds = array<i64: 32, 32>}, {pipeline_mode = #tpu.pipeline_mode<synchronous>, transform_indices = @transform_9, window_bounds = array<i64: 32, 32>}, {pipeline_mode = #tpu.pipeline_mode<synchronous>, transform_indices = @transform_10, window_bounds = array<i64: 32, 256>}, {pipeline_mode = #tpu.pipeline_mode<synchronous>, transform_indices = @transform_11, window_bounds = array<i64: 256, 32>}, {transform_indices = @transform_12, window_bounds = array<i64: 1, 32, 32>}]} {
    %c0 = arith.constant 0 : index
    %c0_0 = arith.constant 0 : index
    %c0_1 = arith.constant 0 : index
    %0 = vector.load %arg1[%c0, %c0_0, %c0_1] : memref<1x32x36xf32, #tpu.memory_space<vmem>>, vector<1x32x36xf32>
    %1 = vector.shape_cast %0 : vector<1x32x36xf32> to vector<32x36xf32>
    %c0_2 = arith.constant 0 : index
    %c0_3 = arith.constant 0 : index
    %c0_4 = arith.constant 0 : index
    %2 = vector.load %arg2[%c0_2, %c0_3, %c0_4] : memref<1x32x32xf32, #tpu.memory_space<vmem>>, vector<1x32x32xf32>
    %3 = vector.shape_cast %2 : vector<1x32x32xf32> to vector<32x32xf32>
    %c0_5 = arith.constant 0 : index
    %c0_6 = arith.constant 0 : index
    %4 = vector.load %arg11[%c0_5, %c0_6] : memref<32x256xf32, #tpu.memory_space<vmem>>, vector<32x256xf32>
    %c0_7 = arith.constant 0 : index
    %c0_8 = arith.constant 0 : index
    %5 = vector.load %arg12[%c0_7, %c0_8] : memref<256x32xf32, #tpu.memory_space<vmem>>, vector<256x32xf32>
    %c0_9 = arith.constant 0 : index
    %c0_10 = arith.constant 0 : index
    %6 = vector.load %arg3[%c0_9, %c0_10] : memref<128x32xf32, #tpu.memory_space<vmem>>, vector<128x32xf32>
    %cst = arith.constant dense<0.000000e+00> : vector<128x36xf32>
    %7 = tpu.matmul %6, %1, %cst {dimension_numbers = #tpu.dot_dimension_numbers<[1], [0], [0], [1], [0, 0, 1, 1], [], []>} : vector<128x32xf32>, vector<32x36xf32>, vector<128x36xf32> -> vector<128x36xf32>
    %8 = vector.extract_strided_slice %7 {offsets = [0, 0], sizes = [32, 36], strides = [1, 1]} : vector<128x36xf32> to vector<32x36xf32>
    %c0_11 = arith.constant 0 : index
    %c0_12 = arith.constant 0 : index
    %c0_13 = arith.constant 0 : index
    %9 = vector.load %arg4[%c0_11, %c0_12, %c0_13] : memref<4x36x256xf32, #tpu.memory_space<vmem>>, vector<1x36x256xf32>
    %10 = vector.shape_cast %9 : vector<1x36x256xf32> to vector<36x256xf32>
    %cst_14 = arith.constant dense<0.000000e+00> : vector<32x256xf32>
    %11 = tpu.matmul %8, %10, %cst_14 {dimension_numbers = #tpu.dot_dimension_numbers<[1], [0], [0], [1], [0, 0, 1, 1], [], []>} : vector<32x36xf32>, vector<36x256xf32>, vector<32x256xf32> -> vector<32x256xf32>
    %c0_15 = arith.constant 0 : index
    %c0_16 = arith.constant 0 : index
    %c0_17 = arith.constant 0 : index
    %12 = vector.load %arg5[%c0_15, %c0_16, %c0_17] : memref<4x36x256xf32, #tpu.memory_space<vmem>>, vector<1x36x256xf32>
    %13 = vector.shape_cast %12 : vector<1x36x256xf32> to vector<36x256xf32>
    %cst_18 = arith.constant dense<0.000000e+00> : vector<32x256xf32>
    %14 = tpu.matmul %8, %13, %cst_18 {dimension_numbers = #tpu.dot_dimension_numbers<[1], [0], [0], [1], [0, 0, 1, 1], [], []>} : vector<32x36xf32>, vector<36x256xf32>, vector<32x256xf32> -> vector<32x256xf32>
    %15 = vector.extract_strided_slice %7 {offsets = [32, 0], sizes = [32, 36], strides = [1, 1]} : vector<128x36xf32> to vector<32x36xf32>
    %c1 = arith.constant 1 : index
    %c0_19 = arith.constant 0 : index
    %c0_20 = arith.constant 0 : index
    %16 = vector.load %arg4[%c1, %c0_19, %c0_20] : memref<4x36x256xf32, #tpu.memory_space<vmem>>, vector<1x36x256xf32>
    %17 = vector.shape_cast %16 : vector<1x36x256xf32> to vector<36x256xf32>
    %cst_21 = arith.constant dense<0.000000e+00> : vector<32x256xf32>
    %18 = tpu.matmul %15, %17, %cst_21 {dimension_numbers = #tpu.dot_dimension_numbers<[1], [0], [0], [1], [0, 0, 1, 1], [], []>} : vector<32x36xf32>, vector<36x256xf32>, vector<32x256xf32> -> vector<32x256xf32>
    %c1_22 = arith.constant 1 : index
    %c0_23 = arith.constant 0 : index
    %c0_24 = arith.constant 0 : index
    %19 = vector.load %arg5[%c1_22, %c0_23, %c0_24] : memref<4x36x256xf32, #tpu.memory_space<vmem>>, vector<1x36x256xf32>
    %20 = vector.shape_cast %19 : vector<1x36x256xf32> to vector<36x256xf32>
    %cst_25 = arith.constant dense<0.000000e+00> : vector<32x256xf32>
    %21 = tpu.matmul %15, %20, %cst_25 {dimension_numbers = #tpu.dot_dimension_numbers<[1], [0], [0], [1], [0, 0, 1, 1], [], []>} : vector<32x36xf32>, vector<36x256xf32>, vector<32x256xf32> -> vector<32x256xf32>
    %22 = vector.extract_strided_slice %7 {offsets = [64, 0], sizes = [32, 36], strides = [1, 1]} : vector<128x36xf32> to vector<32x36xf32>
    %c2 = arith.constant 2 : index
    %c0_26 = arith.constant 0 : index
    %c0_27 = arith.constant 0 : index
    %23 = vector.load %arg4[%c2, %c0_26, %c0_27] : memref<4x36x256xf32, #tpu.memory_space<vmem>>, vector<1x36x256xf32>
    %24 = vector.shape_cast %23 : vector<1x36x256xf32> to vector<36x256xf32>
    %cst_28 = arith.constant dense<0.000000e+00> : vector<32x256xf32>
    %25 = tpu.matmul %22, %24, %cst_28 {dimension_numbers = #tpu.dot_dimension_numbers<[1], [0], [0], [1], [0, 0, 1, 1], [], []>} : vector<32x36xf32>, vector<36x256xf32>, vector<32x256xf32> -> vector<32x256xf32>
    %c2_29 = arith.constant 2 : index
    %c0_30 = arith.constant 0 : index
    %c0_31 = arith.constant 0 : index
    %26 = vector.load %arg5[%c2_29, %c0_30, %c0_31] : memref<4x36x256xf32, #tpu.memory_space<vmem>>, vector<1x36x256xf32>
    %27 = vector.shape_cast %26 : vector<1x36x256xf32> to vector<36x256xf32>
    %cst_32 = arith.constant dense<0.000000e+00> : vector<32x256xf32>
    %28 = tpu.matmul %22, %27, %cst_32 {dimension_numbers = #tpu.dot_dimension_numbers<[1], [0], [0], [1], [0, 0, 1, 1], [], []>} : vector<32x36xf32>, vector<36x256xf32>, vector<32x256xf32> -> vector<32x256xf32>
    %29 = vector.extract_strided_slice %7 {offsets = [96, 0], sizes = [32, 36], strides = [1, 1]} : vector<128x36xf32> to vector<32x36xf32>
    %c3 = arith.constant 3 : index
    %c0_33 = arith.constant 0 : index
    %c0_34 = arith.constant 0 : index
    %30 = vector.load %arg4[%c3, %c0_33, %c0_34] : memref<4x36x256xf32, #tpu.memory_space<vmem>>, vector<1x36x256xf32>
    %31 = vector.shape_cast %30 : vector<1x36x256xf32> to vector<36x256xf32>
    %cst_35 = arith.constant dense<0.000000e+00> : vector<32x256xf32>
    %32 = tpu.matmul %29, %31, %cst_35 {dimension_numbers = #tpu.dot_dimension_numbers<[1], [0], [0], [1], [0, 0, 1, 1], [], []>} : vector<32x36xf32>, vector<36x256xf32>, vector<32x256xf32> -> vector<32x256xf32>
    %c3_36 = arith.constant 3 : index
    %c0_37 = arith.constant 0 : index
    %c0_38 = arith.constant 0 : index
    %33 = vector.load %arg5[%c3_36, %c0_37, %c0_38] : memref<4x36x256xf32, #tpu.memory_space<vmem>>, vector<1x36x256xf32>
    %34 = vector.shape_cast %33 : vector<1x36x256xf32> to vector<36x256xf32>
    %cst_39 = arith.constant dense<0.000000e+00> : vector<32x256xf32>
    %35 = tpu.matmul %29, %34, %cst_39 {dimension_numbers = #tpu.dot_dimension_numbers<[1], [0], [0], [1], [0, 0, 1, 1], [], []>} : vector<32x36xf32>, vector<36x256xf32>, vector<32x256xf32> -> vector<32x256xf32>
    %36 = arith.addf %11, %18 : vector<32x256xf32>
    %37 = arith.addf %25, %32 : vector<32x256xf32>
    %38 = arith.addf %36, %37 : vector<32x256xf32>
    %c0_40 = arith.constant 0 : index
    %c0_41 = arith.constant 0 : index
    %39 = vector.load %arg8[%c0_40, %c0_41] : memref<32x32xf32, #tpu.memory_space<vmem>>, vector<32x32xf32>
    %40 = arith.mulf %38, %4 : vector<32x256xf32>
    %cst_42 = arith.constant dense<0.000000e+00> : vector<32x32xf32>
    %41 = tpu.matmul %40, %5, %cst_42 {dimension_numbers = #tpu.dot_dimension_numbers<[1], [0], [0], [1], [0, 0, 1, 1], [], []>} : vector<32x256xf32>, vector<256x32xf32>, vector<32x32xf32> -> vector<32x32xf32>
    %42 = arith.addf %41, %39 : vector<32x32xf32>
    %43 = arith.negf %42 : vector<32x32xf32>
    %44 = math.exp %43 : vector<32x32xf32>
    %cst_43 = arith.constant 1.000000e+00 : f32
    %45 = vector.broadcast %cst_43 : f32 to vector<32x32xf32>
    %46 = arith.addf %45, %44 : vector<32x32xf32>
    %47 = arith.divf %45, %46 : vector<32x32xf32>
    %48 = arith.addf %14, %21 : vector<32x256xf32>
    %49 = arith.addf %28, %35 : vector<32x256xf32>
    %50 = arith.addf %48, %49 : vector<32x256xf32>
    %c0_44 = arith.constant 0 : index
    %c0_45 = arith.constant 0 : index
    %51 = vector.load %arg9[%c0_44, %c0_45] : memref<32x32xf32, #tpu.memory_space<vmem>>, vector<32x32xf32>
    %52 = arith.mulf %50, %4 : vector<32x256xf32>
    %cst_46 = arith.constant dense<0.000000e+00> : vector<32x32xf32>
    %53 = tpu.matmul %52, %5, %cst_46 {dimension_numbers = #tpu.dot_dimension_numbers<[1], [0], [0], [1], [0, 0, 1, 1], [], []>} : vector<32x256xf32>, vector<256x32xf32>, vector<32x32xf32> -> vector<32x32xf32>
    %54 = arith.addf %53, %51 : vector<32x32xf32>
    %55 = arith.negf %54 : vector<32x32xf32>
    %56 = math.exp %55 : vector<32x32xf32>
    %cst_47 = arith.constant 1.000000e+00 : f32
    %57 = vector.broadcast %cst_47 : f32 to vector<32x32xf32>
    %58 = arith.addf %57, %56 : vector<32x32xf32>
    %59 = arith.divf %57, %58 : vector<32x32xf32>
    %60 = arith.mulf %47, %3 : vector<32x32xf32>
    %c0_48 = arith.constant 0 : index
    %c0_49 = arith.constant 0 : index
    %61 = vector.load %arg3[%c0_48, %c0_49] : memref<128x32xf32, #tpu.memory_space<vmem>>, vector<128x32xf32>
    %cst_50 = arith.constant dense<0.000000e+00> : vector<128x32xf32>
    %62 = tpu.matmul %61, %60, %cst_50 {dimension_numbers = #tpu.dot_dimension_numbers<[1], [0], [0], [1], [0, 0, 1, 1], [], []>} : vector<128x32xf32>, vector<32x32xf32>, vector<128x32xf32> -> vector<128x32xf32>
    %63 = vector.extract_strided_slice %7 {offsets = [0, 0], sizes = [32, 4], strides = [1, 1]} : vector<128x36xf32> to vector<32x4xf32>
    %c0_51 = arith.constant 0 : index
    %c0_52 = arith.constant 0 : index
    %c0_53 = arith.constant 0 : index
    %64 = vector.load %arg6[%c0_51, %c0_52, %c0_53] : memref<4x4x256xf32, #tpu.memory_space<vmem>>, vector<1x4x256xf32>
    %65 = vector.shape_cast %64 : vector<1x4x256xf32> to vector<4x256xf32>
    %cst_54 = arith.constant dense<0.000000e+00> : vector<32x256xf32>
    %66 = tpu.matmul %63, %65, %cst_54 {dimension_numbers = #tpu.dot_dimension_numbers<[1], [0], [0], [1], [0, 0, 1, 1], [], []>} : vector<32x4xf32>, vector<4x256xf32>, vector<32x256xf32> -> vector<32x256xf32>
    %67 = vector.extract_strided_slice %62 {offsets = [0, 0], sizes = [32, 32], strides = [1, 1]} : vector<128x32xf32> to vector<32x32xf32>
    %c0_55 = arith.constant 0 : index
    %c0_56 = arith.constant 0 : index
    %c0_57 = arith.constant 0 : index
    %68 = vector.load %arg7[%c0_55, %c0_56, %c0_57] : memref<4x32x256xf32, #tpu.memory_space<vmem>>, vector<1x32x256xf32>
    %69 = vector.shape_cast %68 : vector<1x32x256xf32> to vector<32x256xf32>
    %cst_58 = arith.constant dense<0.000000e+00> : vector<32x256xf32>
    %70 = tpu.matmul %67, %69, %cst_58 {dimension_numbers = #tpu.dot_dimension_numbers<[1], [0], [0], [1], [0, 0, 1, 1], [], []>} : vector<32x32xf32>, vector<32x256xf32>, vector<32x256xf32> -> vector<32x256xf32>
    %71 = vector.extract_strided_slice %7 {offsets = [32, 0], sizes = [32, 4], strides = [1, 1]} : vector<128x36xf32> to vector<32x4xf32>
    %c1_59 = arith.constant 1 : index
    %c0_60 = arith.constant 0 : index
    %c0_61 = arith.constant 0 : index
    %72 = vector.load %arg6[%c1_59, %c0_60, %c0_61] : memref<4x4x256xf32, #tpu.memory_space<vmem>>, vector<1x4x256xf32>
    %73 = vector.shape_cast %72 : vector<1x4x256xf32> to vector<4x256xf32>
    %cst_62 = arith.constant dense<0.000000e+00> : vector<32x256xf32>
    %74 = tpu.matmul %71, %73, %cst_62 {dimension_numbers = #tpu.dot_dimension_numbers<[1], [0], [0], [1], [0, 0, 1, 1], [], []>} : vector<32x4xf32>, vector<4x256xf32>, vector<32x256xf32> -> vector<32x256xf32>
    %75 = vector.extract_strided_slice %62 {offsets = [32, 0], sizes = [32, 32], strides = [1, 1]} : vector<128x32xf32> to vector<32x32xf32>
    %c1_63 = arith.constant 1 : index
    %c0_64 = arith.constant 0 : index
    %c0_65 = arith.constant 0 : index
    %76 = vector.load %arg7[%c1_63, %c0_64, %c0_65] : memref<4x32x256xf32, #tpu.memory_space<vmem>>, vector<1x32x256xf32>
    %77 = vector.shape_cast %76 : vector<1x32x256xf32> to vector<32x256xf32>
    %cst_66 = arith.constant dense<0.000000e+00> : vector<32x256xf32>
    %78 = tpu.matmul %75, %77, %cst_66 {dimension_numbers = #tpu.dot_dimension_numbers<[1], [0], [0], [1], [0, 0, 1, 1], [], []>} : vector<32x32xf32>, vector<32x256xf32>, vector<32x256xf32> -> vector<32x256xf32>
    %79 = vector.extract_strided_slice %7 {offsets = [64, 0], sizes = [32, 4], strides = [1, 1]} : vector<128x36xf32> to vector<32x4xf32>
    %c2_67 = arith.constant 2 : index
    %c0_68 = arith.constant 0 : index
    %c0_69 = arith.constant 0 : index
    %80 = vector.load %arg6[%c2_67, %c0_68, %c0_69] : memref<4x4x256xf32, #tpu.memory_space<vmem>>, vector<1x4x256xf32>
    %81 = vector.shape_cast %80 : vector<1x4x256xf32> to vector<4x256xf32>
    %cst_70 = arith.constant dense<0.000000e+00> : vector<32x256xf32>
    %82 = tpu.matmul %79, %81, %cst_70 {dimension_numbers = #tpu.dot_dimension_numbers<[1], [0], [0], [1], [0, 0, 1, 1], [], []>} : vector<32x4xf32>, vector<4x256xf32>, vector<32x256xf32> -> vector<32x256xf32>
    %83 = vector.extract_strided_slice %62 {offsets = [64, 0], sizes = [32, 32], strides = [1, 1]} : vector<128x32xf32> to vector<32x32xf32>
    %c2_71 = arith.constant 2 : index
    %c0_72 = arith.constant 0 : index
    %c0_73 = arith.constant 0 : index
    %84 = vector.load %arg7[%c2_71, %c0_72, %c0_73] : memref<4x32x256xf32, #tpu.memory_space<vmem>>, vector<1x32x256xf32>
    %85 = vector.shape_cast %84 : vector<1x32x256xf32> to vector<32x256xf32>
    %cst_74 = arith.constant dense<0.000000e+00> : vector<32x256xf32>
    %86 = tpu.matmul %83, %85, %cst_74 {dimension_numbers = #tpu.dot_dimension_numbers<[1], [0], [0], [1], [0, 0, 1, 1], [], []>} : vector<32x32xf32>, vector<32x256xf32>, vector<32x256xf32> -> vector<32x256xf32>
    %87 = vector.extract_strided_slice %7 {offsets = [96, 0], sizes = [32, 4], strides = [1, 1]} : vector<128x36xf32> to vector<32x4xf32>
    %c3_75 = arith.constant 3 : index
    %c0_76 = arith.constant 0 : index
    %c0_77 = arith.constant 0 : index
    %88 = vector.load %arg6[%c3_75, %c0_76, %c0_77] : memref<4x4x256xf32, #tpu.memory_space<vmem>>, vector<1x4x256xf32>
    %89 = vector.shape_cast %88 : vector<1x4x256xf32> to vector<4x256xf32>
    %cst_78 = arith.constant dense<0.000000e+00> : vector<32x256xf32>
    %90 = tpu.matmul %87, %89, %cst_78 {dimension_numbers = #tpu.dot_dimension_numbers<[1], [0], [0], [1], [0, 0, 1, 1], [], []>} : vector<32x4xf32>, vector<4x256xf32>, vector<32x256xf32> -> vector<32x256xf32>
    %91 = vector.extract_strided_slice %62 {offsets = [96, 0], sizes = [32, 32], strides = [1, 1]} : vector<128x32xf32> to vector<32x32xf32>
    %c3_79 = arith.constant 3 : index
    %c0_80 = arith.constant 0 : index
    %c0_81 = arith.constant 0 : index
    %92 = vector.load %arg7[%c3_79, %c0_80, %c0_81] : memref<4x32x256xf32, #tpu.memory_space<vmem>>, vector<1x32x256xf32>
    %93 = vector.shape_cast %92 : vector<1x32x256xf32> to vector<32x256xf32>
    %cst_82 = arith.constant dense<0.000000e+00> : vector<32x256xf32>
    %94 = tpu.matmul %91, %93, %cst_82 {dimension_numbers = #tpu.dot_dimension_numbers<[1], [0], [0], [1], [0, 0, 1, 1], [], []>} : vector<32x32xf32>, vector<32x256xf32>, vector<32x256xf32> -> vector<32x256xf32>
    %95 = arith.addf %66, %70 : vector<32x256xf32>
    %96 = arith.addf %74, %78 : vector<32x256xf32>
    %97 = arith.addf %82, %86 : vector<32x256xf32>
    %98 = arith.addf %90, %94 : vector<32x256xf32>
    %99 = arith.addf %95, %96 : vector<32x256xf32>
    %100 = arith.addf %97, %98 : vector<32x256xf32>
    %101 = arith.addf %99, %100 : vector<32x256xf32>
    %c0_83 = arith.constant 0 : index
    %c0_84 = arith.constant 0 : index
    %102 = vector.load %arg10[%c0_83, %c0_84] : memref<32x32xf32, #tpu.memory_space<vmem>>, vector<32x32xf32>
    %103 = arith.mulf %101, %4 : vector<32x256xf32>
    %cst_85 = arith.constant dense<0.000000e+00> : vector<32x32xf32>
    %104 = tpu.matmul %103, %5, %cst_85 {dimension_numbers = #tpu.dot_dimension_numbers<[1], [0], [0], [1], [0, 0, 1, 1], [], []>} : vector<32x256xf32>, vector<256x32xf32>, vector<32x32xf32> -> vector<32x32xf32>
    %105 = arith.addf %104, %102 : vector<32x32xf32>
    %106 = math.tanh %105 : vector<32x32xf32>
    %107 = arith.mulf %59, %3 : vector<32x32xf32>
    %cst_86 = arith.constant 1.000000e+00 : f32
    %108 = vector.broadcast %cst_86 : f32 to vector<32x32xf32>
    %109 = arith.subf %108, %59 : vector<32x32xf32>
    %110 = arith.mulf %109, %106 : vector<32x32xf32>
    %111 = arith.addf %107, %110 : vector<32x32xf32>
    %c0_87 = arith.constant 0 : index
    %c0_88 = arith.constant 0 : index
    %c0_89 = arith.constant 0 : index
    %112 = vector.load %arg13[%c0_87, %c0_88, %c0_89] : memref<1x32x32xf32, #tpu.memory_space<vmem>>, vector<1x32x32xf32>
    %113 = vector.shape_cast %112 : vector<1x32x32xf32> to vector<32x32xf32>
    %114 = vector.shape_cast %111 : vector<32x32xf32> to vector<1x32x32xf32>
    tpu.vector_store %arg13[%c0_87, %c0_88, %c0_89], %114 {strides = array<i32>} : memref<1x32x32xf32, #tpu.memory_space<vmem>>, vector<1x32x32xf32>,
    return
  }
  func.func @transform_0(%arg0: i32) -> (i32, i32, i32) {
    %c0_i32 = arith.constant 0 : i32
    %c0_i32_0 = arith.constant 0 : i32
    %c0_i32_1 = arith.constant 0 : i32
    return %arg0, %c0_i32, %c0_i32_0 : i32, i32, i32
  }
  func.func @transform_1(%arg0: i32) -> (i32, i32, i32) {
    %c0_i32 = arith.constant 0 : i32
    %c0_i32_0 = arith.constant 0 : i32
    %c0_i32_1 = arith.constant 0 : i32
    return %arg0, %c0_i32, %c0_i32_0 : i32, i32, i32
  }
  func.func @transform_2(%arg0: i32) -> (i32, i32) {
    %c0_i32 = arith.constant 0 : i32
    %c0_i32_0 = arith.constant 0 : i32
    %c0_i32_1 = arith.constant 0 : i32
    return %c0_i32, %c0_i32_0 : i32, i32
  }
  func.func @transform_3(%arg0: i32) -> (i32, i32, i32) {
    %c0_i32 = arith.constant 0 : i32
    %c0_i32_0 = arith.constant 0 : i32
    %c0_i32_1 = arith.constant 0 : i32
    %c0_i32_2 = arith.constant 0 : i32
    return %c0_i32, %c0_i32_0, %c0_i32_1 : i32, i32, i32
  }
  func.func @transform_4(%arg0: i32) -> (i32, i32, i32) {
    %c0_i32 = arith.constant 0 : i32
    %c0_i32_0 = arith.constant 0 : i32
    %c0_i32_1 = arith.constant 0 : i32
    %c0_i32_2 = arith.constant 0 : i32
    return %c0_i32, %c0_i32_0, %c0_i32_1 : i32, i32, i32
  }
  func.func @transform_5(%arg0: i32) -> (i32, i32, i32) {
    %c0_i32 = arith.constant 0 : i32
    %c0_i32_0 = arith.constant 0 : i32
    %c0_i32_1 = arith.constant 0 : i32
    %c0_i32_2 = arith.constant 0 : i32
    return %c0_i32, %c0_i32_0, %c0_i32_1 : i32, i32, i32
  }
  func.func @transform_6(%arg0: i32) -> (i32, i32, i32) {
    %c0_i32 = arith.constant 0 : i32
    %c0_i32_0 = arith.constant 0 : i32
    %c0_i32_1 = arith.constant 0 : i32
    %c0_i32_2 = arith.constant 0 : i32
    return %c0_i32, %c0_i32_0, %c0_i32_1 : i32, i32, i32
  }
  func.func @transform_7(%arg0: i32) -> (i32, i32) {
    %c0_i32 = arith.constant 0 : i32
    %c0_i32_0 = arith.constant 0 : i32
    %c0_i32_1 = arith.constant 0 : i32
    return %c0_i32, %c0_i32_0 : i32, i32
  }
  func.func @transform_8(%arg0: i32) -> (i32, i32) {
    %c0_i32 = arith.constant 0 : i32
    %c0_i32_0 = arith.constant 0 : i32
    %c0_i32_1 = arith.constant 0 : i32
    return %c0_i32, %c0_i32_0 : i32, i32
  }
  func.func @transform_9(%arg0: i32) -> (i32, i32) {
    %c0_i32 = arith.constant 0 : i32
    %c0_i32_0 = arith.constant 0 : i32
    %c0_i32_1 = arith.constant 0 : i32
    return %c0_i32, %c0_i32_0 : i32, i32
  }
  func.func @transform_10(%arg0: i32) -> (i32, i32) {
    %c0_i32 = arith.constant 0 : i32
    %c0_i32_0 = arith.constant 0 : i32
    %c0_i32_1 = arith.constant 0 : i32
    return %c0_i32, %c0_i32_0 : i32, i32
  }
  func.func @transform_11(%arg0: i32) -> (i32, i32) {
    %c0_i32 = arith.constant 0 : i32
    %c0_i32_0 = arith.constant 0 : i32
    %c0_i32_1 = arith.constant 0 : i32
    return %c0_i32, %c0_i32_0 : i32, i32
  }
  func.func @transform_12(%arg0: i32) -> (i32, i32, i32) {
    %c0_i32 = arith.constant 0 : i32
    %c0_i32_0 = arith.constant 0 : i32
    %c0_i32_1 = arith.constant 0 : i32
    return %arg0, %c0_i32, %c0_i32_0 : i32, i32, i32
  }
}

</mosaic_0001>

<llo_original>
// kernel: tpu_custom_call.1
$region0: #{tpu_custom_call.1}
  #allocation0 [shape = 'u32[]', space=smem, size = 0x4, offset = 0x4, fixed_abs, tag = 'smem constant byte address 0x4 - core index']
  #allocation1 [shape = 'u32[144,128]{1,0:T(1,128)}', space=vmem, size = 0x12000, scoped, tag = 'internal scratch']
  %s0 = inlined_call_operand.vmem [shape: f32[1,32,36], index: 0, kind: input, shape index: {}]
  %s1 = inlined_call_operand.vmem [shape: f32[1,32,32], index: 1, kind: input, shape index: {}]
  %s2 = inlined_call_operand.vmem [shape: f32[128,32], index: 2, kind: input, shape index: {}]
  %s3 = inlined_call_operand.vmem [shape: f32[4,36,256], index: 3, kind: input, shape index: {}]
  %s4 = inlined_call_operand.vmem [shape: f32[4,36,256], index: 4, kind: input, shape index: {}]
  %s5 = inlined_call_operand.vmem [shape: f32[4,4,256], index: 5, kind: input, shape index: {}]
  %s6 = inlined_call_operand.vmem [shape: f32[4,32,256], index: 6, kind: input, shape index: {}]
  %s7 = inlined_call_operand.vmem [shape: f32[32,32], index: 7, kind: input, shape index: {}]
  %s8 = inlined_call_operand.vmem [shape: f32[32,32], index: 8, kind: input, shape index: {}]
  %s9 = inlined_call_operand.vmem [shape: f32[32,32], index: 9, kind: input, shape index: {}]
  %s10 = inlined_call_operand.vmem [shape: f32[32,256], index: 10, kind: input, shape index: {}]
  %s11 = inlined_call_operand.vmem [shape: f32[256,32], index: 11, kind: input, shape index: {}]
  %s12 = inlined_call_operand.hbm [shape: f32[1,32,32], index: 12, kind: output, shape index: {}]
  %s13 = sld [smem:[#allocation0]]
  $region58: #{tpu_custom_call.1} parent=0
    _
  %s15 = ssub.s32 1, %s13
  %s16 = scalar_select 0, %s15, %s13
  $region1: #{tpu_custom_call.1} parent=0
    #allocation2 [shape = 'u8[16384]{0}', space=vmem, size = 0x4000, scoped, tag = 'output window, operand 0, single buffered']
    #allocation3 [shape = 's32[1]{0}', space=sflag, size = 0x4, scoped, tag = 'scoped memory for tpu_custom_call.1']
    %17 = vsyncpa [#allocation3], 0
    // Predicated region
    $region2: #{tpu_custom_call.1} parent=1 // pred_check
      _
    $region3: #{tpu_custom_call.1} parent=1 // pred_check_branch
      %19 = sbr.rel (0) target = $region5
    $region4: #{tpu_custom_call.1} parent=1 // pred_region
      _
    $region5: #{tpu_custom_call.1} parent=1 // pred_fallthru
      _
    // Predicated region
    $region6: #{tpu_custom_call.1} parent=1 // pred_check
      _
    $region7: #{tpu_custom_call.1} parent=1 // pred_check_branch
      %21 = sbr.rel (0) target = $region9
    $region8: #{tpu_custom_call.1} parent=1 // pred_region
      _
    $region9: #{tpu_custom_call.1} parent=1 // pred_fallthru
      _
    // Predicated region
    $region10: #{tpu_custom_call.1} parent=1 // pred_check
      _
    $region11: #{tpu_custom_call.1} parent=1 // pred_check_branch
      %23 = sbr.rel (0) target = $region13
    $region12: #{tpu_custom_call.1} parent=1 // pred_region
      _
    $region13: #{tpu_custom_call.1} parent=1 // pred_fallthru
      _
    // Predicated region
    $region14: #{tpu_custom_call.1} parent=1 // pred_check
      _
    $region15: #{tpu_custom_call.1} parent=1 // pred_check_branch
      %25 = sbr.rel (0) target = $region17
    $region16: #{tpu_custom_call.1} parent=1 // pred_region
      _
    $region17: #{tpu_custom_call.1} parent=1 // pred_fallthru
      _
    // Predicated region
    $region18: #{tpu_custom_call.1} parent=1 // pred_check
      _
    $region19: #{tpu_custom_call.1} parent=1 // pred_check_branch
      %27 = sbr.rel (0) target = $region21
    $region20: #{tpu_custom_call.1} parent=1 // pred_region
      _
    $region21: #{tpu_custom_call.1} parent=1 // pred_fallthru
      _
    // Predicated region
    $region22: #{tpu_custom_call.1} parent=1 // pred_check
      _
    $region23: #{tpu_custom_call.1} parent=1 // pred_check_branch
      %29 = sbr.rel (0) target = $region25
    $region24: #{tpu_custom_call.1} parent=1 // pred_region
      _
    $region25: #{tpu_custom_call.1} parent=1 // pred_fallthru
      _
    // Predicated region
    $region26: #{tpu_custom_call.1} parent=1 // pred_check
      _
    $region27: #{tpu_custom_call.1} parent=1 // pred_check_branch
      %31 = sbr.rel (0) target = $region29
    $region28: #{tpu_custom_call.1} parent=1 // pred_region
      _
    $region29: #{tpu_custom_call.1} parent=1 // pred_fallthru
      _
    // Predicated region
    $region30: #{tpu_custom_call.1} parent=1 // pred_check
      _
    $region31: #{tpu_custom_call.1} parent=1 // pred_check_branch
      %33 = sbr.rel (0) target = $region33
    $region32: #{tpu_custom_call.1} parent=1 // pred_region
      _
    $region33: #{tpu_custom_call.1} parent=1 // pred_fallthru
      _
    // Predicated region
    $region34: #{tpu_custom_call.1} parent=1 // pred_check
      _
    $region35: #{tpu_custom_call.1} parent=1 // pred_check_branch
      %35 = sbr.rel (0) target = $region37
    $region36: #{tpu_custom_call.1} parent=1 // pred_region
      _
    $region37: #{tpu_custom_call.1} parent=1 // pred_fallthru
      _
    // Predicated region
    $region38: #{tpu_custom_call.1} parent=1 // pred_check
      _
    $region39: #{tpu_custom_call.1} parent=1 // pred_check_branch
      %37 = sbr.rel (0) target = $region41
    $region40: #{tpu_custom_call.1} parent=1 // pred_region
      _
    $region41: #{tpu_custom_call.1} parent=1 // pred_fallthru
      _
    // Predicated region
    $region42: #{tpu_custom_call.1} parent=1 // pred_check
      _
    $region43: #{tpu_custom_call.1} parent=1 // pred_check_branch
      %39 = sbr.rel (0) target = $region45
    $region44: #{tpu_custom_call.1} parent=1 // pred_region
      _
    $region45: #{tpu_custom_call.1} parent=1 // pred_fallthru
      _
    // Predicated region
    $region46: #{tpu_custom_call.1} parent=1 // pred_check
      _
    $region47: #{tpu_custom_call.1} parent=1 // pred_check_branch
      %41 = sbr.rel (0) target = $region49
    $region48: #{tpu_custom_call.1} parent=1 // pred_region
      _
    $region49: #{tpu_custom_call.1} parent=1 // pred_fallthru
      _
    %v42 = vld [vmem:[%s0] sm:$0xff]
    %v43 = vld [vmem:[%s0 + $0x8] sm:$0xff]
    %v44 = vld [vmem:[%s0 + $0x10] sm:$0xff]
    %v45 = vld [vmem:[%s0 + $0x18] sm:$0xff]
    %v46 = vld [vmem:[%s1] sm:$0xff]
    %v47 = vld [vmem:[%s1 + $0x8] sm:$0xff]
    %v48 = vld [vmem:[%s1 + $0x10] sm:$0xff]
    %v49 = vld [vmem:[%s1 + $0x18] sm:$0xff]
    %v50 = vld [vmem:[%s10] sm:$0xff]
    %v51 = vld [vmem:[%s10 + $0x8] sm:$0xff]
    %v52 = vld [vmem:[%s10 + $0x10] sm:$0xff]
    %v53 = vld [vmem:[%s10 + $0x18] sm:$0xff]
    %v54 = vld [vmem:[%s10 + $0x20] sm:$0xff]
    %v55 = vld [vmem:[%s10 + $0x28] sm:$0xff]
    %v56 = vld [vmem:[%s10 + $0x30] sm:$0xff]
    %v57 = vld [vmem:[%s10 + $0x38] sm:$0xff]
    %v58 = vld [vmem:[%s11] sm:$0xff]
    %v59 = vld [vmem:[%s11 + $0x8] sm:$0xff]
    %v60 = vld [vmem:[%s11 + $0x10] sm:$0xff]
    %v61 = vld [vmem:[%s11 + $0x18] sm:$0xff]
    %v62 = vld [vmem:[%s11 + $0x20] sm:$0xff]
    %v63 = vld [vmem:[%s11 + $0x28] sm:$0xff]
    %v64 = vld [vmem:[%s11 + $0x30] sm:$0xff]
    %v65 = vld [vmem:[%s11 + $0x38] sm:$0xff]
    %v66 = vld [vmem:[%s11 + $0x40] sm:$0xff]
    %v67 = vld [vmem:[%s11 + $0x48] sm:$0xff]
    %v68 = vld [vmem:[%s11 + $0x50] sm:$0xff]
    %v69 = vld [vmem:[%s11 + $0x58] sm:$0xff]
    %v70 = vld [vmem:[%s11 + $0x60] sm:$0xff]
    %v71 = vld [vmem:[%s11 + $0x68] sm:$0xff]
    %v72 = vld [vmem:[%s11 + $0x70] sm:$0xff]
    %v73 = vld [vmem:[%s11 + $0x78] sm:$0xff]
    %v74 = vld [vmem:[%s11 + $0x80] sm:$0xff]
    %v75 = vld [vmem:[%s11 + $0x88] sm:$0xff]
    %v76 = vld [vmem:[%s11 + $0x90] sm:$0xff]
    %v77 = vld [vmem:[%s11 + $0x98] sm:$0xff]
    %v78 = vld [vmem:[%s11 + $0xa0] sm:$0xff]
    %v79 = vld [vmem:[%s11 + $0xa8] sm:$0xff]
    %v80 = vld [vmem:[%s11 + $0xb0] sm:$0xff]
    %v81 = vld [vmem:[%s11 + $0xb8] sm:$0xff]
    %v82 = vld [vmem:[%s11 + $0xc0] sm:$0xff]
    %v83 = vld [vmem:[%s11 + $0xc8] sm:$0xff]
    %v84 = vld [vmem:[%s11 + $0xd0] sm:$0xff]
    %v85 = vld [vmem:[%s11 + $0xd8] sm:$0xff]
    %v86 = vld [vmem:[%s11 + $0xe0] sm:$0xff]
    %v87 = vld [vmem:[%s11 + $0xe8] sm:$0xff]
    %v88 = vld [vmem:[%s11 + $0xf0] sm:$0xff]
    %v89 = vld [vmem:[%s11 + $0xf8] sm:$0xff]
    %v90 = vld [vmem:[%s2] sm:$0xff]
    %v91 = vld [vmem:[%s2 + $0x8] sm:$0xff]
    %v92 = vld [vmem:[%s2 + $0x10] sm:$0xff]
    %v93 = vld [vmem:[%s2 + $0x18] sm:$0xff]
    %v94 = vld [vmem:[%s2 + $0x20] sm:$0xff]
    %v95 = vld [vmem:[%s2 + $0x28] sm:$0xff]
    %v96 = vld [vmem:[%s2 + $0x30] sm:$0xff]
    %v97 = vld [vmem:[%s2 + $0x38] sm:$0xff]
    %v98 = vld [vmem:[%s2 + $0x40] sm:$0xff]
    %v99 = vld [vmem:[%s2 + $0x48] sm:$0xff]
    %v100 = vld [vmem:[%s2 + $0x50] sm:$0xff]
    %v101 = vld [vmem:[%s2 + $0x58] sm:$0xff]
    %v102 = vld [vmem:[%s2 + $0x60] sm:$0xff]
    %v103 = vld [vmem:[%s2 + $0x68] sm:$0xff]
    %v104 = vld [vmem:[%s2 + $0x70] sm:$0xff]
    %v105 = vld [vmem:[%s2 + $0x78] sm:$0xff]
    %vm106 = vcmask 261120
    %v108 = vsel %vm106, %v90, 0
    %v111 = vsel %vm106, %v91, 0
    %v114 = vsel %vm106, %v92, 0
    %v117 = vsel %vm106, %v93, 0
    %v120 = vsel %vm106, %v94, 0
    %v123 = vsel %vm106, %v95, 0
    %v126 = vsel %vm106, %v96, 0
    %v129 = vsel %vm106, %v97, 0
    %v132 = vsel %vm106, %v98, 0
    %v135 = vsel %vm106, %v99, 0
    %v138 = vsel %vm106, %v100, 0
    %v141 = vsel %vm106, %v101, 0
    %v144 = vsel %vm106, %v102, 0
    %v147 = vsel %vm106, %v103, 0
    %v150 = vsel %vm106, %v104, 0
    %v153 = vsel %vm106, %v105, 0
    %155 = vmatprep.subr.mxu0 0.0
    %156 = vmatpush1.msra.mxu0 %v42
    %157 = vmatprep.subr.mxu0 0.0
    %158 = vmatpush1.msra.mxu0 %v43
    %159 = vmatprep.subr.mxu0 0.0
    %160 = vmatpush1.msra.mxu0 %v44
    %161 = vmatprep.subr.mxu0 0.0
    %162 = vmatpush1.msra.mxu0 %v45
    %163 = vmatprep.subr.mxu0 0.0
    %164 = vmatpush1.msra.mxu0 0.0
    %165 = vmatprep.subr.mxu0 0.0
    %166 = vmatpush1.msra.mxu0 0.0
    %167 = vmatprep.subr.mxu0 0.0
    %168 = vmatpush1.msra.mxu0 0.0
    %169 = vmatprep.subr.mxu0 0.0
    %170 = vmatpush1.msra.mxu0 0.0
    %171 = vmatprep.subr.mxu0 0.0
    %172 = vmatpush1.msra.mxu0 0.0
    %173 = vmatprep.subr.mxu0 0.0
    %174 = vmatpush1.msra.mxu0 0.0
    %175 = vmatprep.subr.mxu0 0.0
    %176 = vmatpush1.msra.mxu0 0.0
    %177 = vmatprep.subr.mxu0 0.0
    %178 = vmatpush1.msra.mxu0 0.0
    %179 = vmatprep.subr.mxu0 0.0
    %180 = vmatpush1.msra.mxu0 0.0
    %181 = vmatprep.subr.mxu0 0.0
    %182 = vmatpush1.msra.mxu0 0.0
    %183 = vmatprep.subr.mxu0 0.0
    %184 = vmatpush1.msra.mxu0 0.0
    %185 = vmatprep.subr.mxu0 0.0
    %186 = vmatpush1.msra.mxu0 0.0
    %187 = vmatprep.subr.mxu0 0.0
    %188 = vmatpush1.msra.mxu0 0.0
    %189 = vmatprep.subr.mxu0 0.0
    %190 = vmatpush1.msra.mxu0 0.0
    %191 = vmatprep.subr.mxu0 0.0
    %192 = vmatpush1.msra.mxu0 0.0
    %193 = vmatprep.subr.mxu0 0.0
    %194 = vmatpush1.msra.mxu0 0.0
    %195 = vmatprep.subr.mxu0 0.0
    %196 = vmatpush1.msra.mxu0 0.0
    %197 = vmatprep.subr.mxu0 0.0
    %198 = vmatpush1.msra.mxu0 0.0
    %199 = vmatprep.subr.mxu0 0.0
    %200 = vmatpush1.msra.mxu0 0.0
    %201 = vmatprep.subr.mxu0 0.0
    %202 = vmatpush1.msra.mxu0 0.0
    %203 = vmatprep.subr.mxu0 0.0
    %204 = vmatpush1.msra.mxu0 0.0
    %205 = vmatprep.subr.mxu0 0.0
    %206 = vmatpush1.msra.mxu0 0.0
    %207 = vmatprep.subr.mxu0 0.0
    %208 = vmatpush1.msra.mxu0 0.0
    %209 = vmatprep.subr.mxu0 0.0
    %210 = vmatpush1.msra.mxu0 0.0
    %211 = vmatprep.subr.mxu0 0.0
    %212 = vmatpush1.msra.mxu0 0.0
    %213 = vmatprep.subr.mxu0 0.0
    %214 = vmatpush1.msra.mxu0 0.0
    %215 = vmatprep.subr.mxu0 0.0
    %216 = vmatpush1.msra.mxu0 0.0
    %217 = vmatprep.subr.mxu0 0.0
    %218 = vmatpush1.msra.mxu0 0.0
    %219 = vmatprep.mubr.f32.mxu0 0.0
    %220 = vmatmul.mubr.f32.gmra.mrb[0].mxu0 %v108
    %v221 = vpop.f32.mrb[0].mxu0
    %v222 = vadd.f32 0.0, %v221
    %v223 = vpop.f32.mrb[0].mxu0
    %224 = vmatprep.mubr.f32.mxu0 0.0
    %225 = vmatmul.mubr.f32.gmra.mrb[0].mxu0 %v111
    %v226 = vpop.f32.mrb[0].mxu0
    %v227 = vadd.f32 0.0, %v226
    %v228 = vpop.f32.mrb[0].mxu0
    %229 = vmatprep.mubr.f32.mxu0 0.0
    %230 = vmatmul.mubr.f32.gmra.mrb[0].mxu0 %v114
    %v231 = vpop.f32.mrb[0].mxu0
    %v232 = vadd.f32 0.0, %v231
    %v233 = vpop.f32.mrb[0].mxu0
    %234 = vmatprep.mubr.f32.mxu0 0.0
    %235 = vmatmul.mubr.f32.gmra.mrb[0].mxu0 %v117
    %v236 = vpop.f32.mrb[0].mxu0
    %v237 = vadd.f32 0.0, %v236
    %v238 = vpop.f32.mrb[0].mxu0
    %239 = vmatprep.mubr.f32.mxu0 0.0
    %240 = vmatmul.mubr.f32.gmra.mrb[0].mxu0 %v120
    %v241 = vpop.f32.mrb[0].mxu0
    %v242 = vadd.f32 0.0, %v241
    %v243 = vpop.f32.mrb[0].mxu0
    %244 = vmatprep.mubr.f32.mxu0 0.0
    %245 = vmatmul.mubr.f32.gmra.mrb[0].mxu0 %v123
    %v246 = vpop.f32.mrb[0].mxu0
    %v247 = vadd.f32 0.0, %v246
    %v248 = vpop.f32.mrb[0].mxu0
    %249 = vmatprep.mubr.f32.mxu0 0.0
    %250 = vmatmul.mubr.f32.gmra.mrb[0].mxu0 %v126
    %v251 = vpop.f32.mrb[0].mxu0
    %v252 = vadd.f32 0.0, %v251
    %v253 = vpop.f32.mrb[0].mxu0
    %254 = vmatprep.mubr.f32.mxu0 0.0
    %255 = vmatmul.mubr.f32.gmra.mrb[0].mxu0 %v129
    %v256 = vpop.f32.mrb[0].mxu0
    %v257 = vadd.f32 0.0, %v256
    %v258 = vpop.f32.mrb[0].mxu0
    %259 = vmatprep.mubr.f32.mxu0 0.0
    %260 = vmatmul.mubr.f32.gmra.mrb[0].mxu0 %v132
    %v261 = vpop.f32.mrb[0].mxu0
    %v262 = vadd.f32 0.0, %v261
    %v263 = vpop.f32.mrb[0].mxu0
    %264 = vmatprep.mubr.f32.mxu0 0.0
    %265 = vmatmul.mubr.f32.gmra.mrb[0].mxu0 %v135
    %v266 = vpop.f32.mrb[0].mxu0
    %v267 = vadd.f32 0.0, %v266
    %v268 = vpop.f32.mrb[0].mxu0
    %269 = vmatprep.mubr.f32.mxu0 0.0
    %270 = vmatmul.mubr.f32.gmra.mrb[0].mxu0 %v138
    %v271 = vpop.f32.mrb[0].mxu0
    %v272 = vadd.f32 0.0, %v271
    %v273 = vpop.f32.mrb[0].mxu0
    %274 = vmatprep.mubr.f32.mxu0 0.0
    %275 = vmatmul.mubr.f32.gmra.mrb[0].mxu0 %v141
    %v276 = vpop.f32.mrb[0].mxu0
    %v277 = vadd.f32 0.0, %v276
    %v278 = vpop.f32.mrb[0].mxu0
    %279 = vmatprep.mubr.f32.mxu0 0.0
    %280 = vmatmul.mubr.f32.gmra.mrb[0].mxu0 %v144
    %v281 = vpop.f32.mrb[0].mxu0
    %v282 = vadd.f32 0.0, %v281
    %v283 = vpop.f32.mrb[0].mxu0
    %284 = vmatprep.mubr.f32.mxu0 0.0
    %285 = vmatmul.mubr.f32.gmra.mrb[0].mxu0 %v147
    %v286 = vpop.f32.mrb[0].mxu0
    %v287 = vadd.f32 0.0, %v286
    %v288 = vpop.f32.mrb[0].mxu0
    %289 = vmatprep.mubr.f32.mxu0 0.0
    %290 = vmatmul.mubr.f32.gmra.mrb[0].mxu0 %v150
    %v291 = vpop.f32.mrb[0].mxu0
    %v292 = vadd.f32 0.0, %v291
    %v293 = vpop.f32.mrb[0].mxu0
    %294 = vmatprep.mubr.f32.mxu0 0.0
    %295 = vmatmul.mubr.f32.gmra.mrb[0].mxu0 %v153
    %v296 = vpop.f32.mrb[0].mxu0
    %v297 = vadd.f32 0.0, %v296
    %v298 = vpop.f32.mrb[0].mxu0
    %299 = vdwg.mxu0
    %v300 = vld [vmem:[%s3] sm:$0xff]
    %v301 = vld [vmem:[%s3 + $0x8] sm:$0xff]
    %v302 = vld [vmem:[%s3 + $0x10] sm:$0xff]
    %v303 = vld [vmem:[%s3 + $0x18] sm:$0xff]
    %v304 = vld [vmem:[%s3 + $0x20] sm:$0xff]
    %v305 = vld [vmem:[%s3 + $0x28] sm:$0xff]
    %v306 = vld [vmem:[%s3 + $0x30] sm:$0xff]
    %v307 = vld [vmem:[%s3 + $0x38] sm:$0xff]
    %v308 = vld [vmem:[%s3 + $0x40] sm:$0xf]
    %v309 = vld [vmem:[%s3 + $0x48] sm:$0xf]
    %v310 = vld [vmem:[%s4] sm:$0xff]
    %v311 = vld [vmem:[%s4 + $0x8] sm:$0xff]
    %v312 = vld [vmem:[%s4 + $0x10] sm:$0xff]
    %v313 = vld [vmem:[%s4 + $0x18] sm:$0xff]
    %v314 = vld [vmem:[%s4 + $0x20] sm:$0xff]
    %v315 = vld [vmem:[%s4 + $0x28] sm:$0xff]
    %v316 = vld [vmem:[%s4 + $0x30] sm:$0xff]
    %v317 = vld [vmem:[%s4 + $0x38] sm:$0xff]
    %v318 = vld [vmem:[%s4 + $0x40] sm:$0xf]
    %v319 = vld [vmem:[%s4 + $0x48] sm:$0xf]
    %s320 = scalar_lea.vmem %s3, 80
    %v321 = vld [vmem:[%s320] sm:$0xff]
    %v322 = vld [vmem:[%s320 + $0x8] sm:$0xff]
    %v323 = vld [vmem:[%s320 + $0x10] sm:$0xff]
    %v324 = vld [vmem:[%s320 + $0x18] sm:$0xff]
    %v325 = vld [vmem:[%s320 + $0x20] sm:$0xff]
    %v326 = vld [vmem:[%s320 + $0x28] sm:$0xff]
    %v327 = vld [vmem:[%s320 + $0x30] sm:$0xff]
    %v328 = vld [vmem:[%s320 + $0x38] sm:$0xff]
    %v329 = vld [vmem:[%s320 + $0x40] sm:$0xf]
    %v330 = vld [vmem:[%s320 + $0x48] sm:$0xf]
    %vm331 = vcmask 293888
    %v333 = vsel %vm331, %v242, 0
    %v336 = vsel %vm331, %v247, 0
    %v339 = vsel %vm331, %v252, 0
    %v342 = vsel %vm331, %v257, 0
    %vm344 = vcmask 1043456
    %v346 = vsel %vm344, %v329, 0
    %v349 = vsel %vm344, %v330, 0
    %351 = vmatprep.subr.mxu0 %v322
    %352 = vmatpush1.msra.mxu0 %v321
    %353 = vmatprep.subr.mxu0 %v324
    %354 = vmatpush1.msra.mxu0 %v323
    %355 = vmatprep.subr.mxu0 %v326
    %356 = vmatpush1.msra.mxu0 %v325
    %357 = vmatprep.subr.mxu0 %v328
    %358 = vmatpush1.msra.mxu0 %v327
    %359 = vmatprep.subr.mxu0 %v349
    %360 = vmatpush1.msra.mxu0 %v346
    %361 = vmatprep.subr.mxu0 0.0
    %362 = vmatpush1.msra.mxu0 0.0
    %363 = vmatprep.subr.mxu0 0.0
    %364 = vmatpush1.msra.mxu0 0.0
    %365 = vmatprep.subr.mxu0 0.0
    %366 = vmatpush1.msra.mxu0 0.0
    %367 = vmatprep.subr.mxu0 0.0
    %368 = vmatpush1.msra.mxu0 0.0
    %369 = vmatprep.subr.mxu0 0.0
    %370 = vmatpush1.msra.mxu0 0.0
    %371 = vmatprep.subr.mxu0 0.0
    %372 = vmatpush1.msra.mxu0 0.0
    %373 = vmatprep.subr.mxu0 0.0
    %374 = vmatpush1.msra.mxu0 0.0
    %375 = vmatprep.subr.mxu0 0.0
    %376 = vmatpush1.msra.mxu0 0.0
    %377 = vmatprep.subr.mxu0 0.0
    %378 = vmatpush1.msra.mxu0 0.0
    %379 = vmatprep.subr.mxu0 0.0
    %380 = vmatpush1.msra.mxu0 0.0
    %381 = vmatprep.subr.mxu0 0.0
    %382 = vmatpush1.msra.mxu0 0.0
    %383 = vmatprep.subr.mxu0 0.0
    %384 = vmatpush1.msra.mxu0 0.0
    %385 = vmatprep.subr.mxu0 0.0
    %386 = vmatpush1.msra.mxu0 0.0
    %387 = vmatprep.subr.mxu0 0.0
    %388 = vmatpush1.msra.mxu0 0.0
    %389 = vmatprep.subr.mxu0 0.0
    %390 = vmatpush1.msra.mxu0 0.0
    %391 = vmatprep.subr.mxu0 0.0
    %392 = vmatpush1.msra.mxu0 0.0
    %393 = vmatprep.subr.mxu0 0.0
    %394 = vmatpush1.msra.mxu0 0.0
    %395 = vmatprep.subr.mxu0 0.0
    %396 = vmatpush1.msra.mxu0 0.0
    %397 = vmatprep.subr.mxu0 0.0
    %398 = vmatpush1.msra.mxu0 0.0
    %399 = vmatprep.subr.mxu0 0.0
    %400 = vmatpush1.msra.mxu0 0.0
    %401 = vmatprep.subr.mxu0 0.0
    %402 = vmatpush1.msra.mxu0 0.0
    %403 = vmatprep.subr.mxu0 0.0
    %404 = vmatpush1.msra.mxu0 0.0
    %405 = vmatprep.subr.mxu0 0.0
    %406 = vmatpush1.msra.mxu0 0.0
    %407 = vmatprep.subr.mxu0 0.0
    %408 = vmatpush1.msra.mxu0 0.0
    %409 = vmatprep.subr.mxu0 0.0
    %410 = vmatpush1.msra.mxu0 0.0
    %411 = vmatprep.subr.mxu0 0.0
    %412 = vmatpush1.msra.mxu0 0.0
    %413 = vmatprep.subr.mxu0 0.0
    %414 = vmatpush1.msra.mxu0 0.0
    %415 = vmatprep.mubr.f32.mxu0 0.0
    %416 = vmatmul.mubr.f32.gmra.mrb[0].mxu0 %v333
    %v417 = vpop.f32.mrb[0].mxu0
    %v418 = vadd.f32 0.0, %v417
    %v419 = vpop.f32.mrb[0].mxu0
    %v420 = vadd.f32 0.0, %v419
    %421 = vmatprep.mubr.f32.mxu0 0.0
    %422 = vmatmul.mubr.f32.gmra.mrb[0].mxu0 %v336
    %v423 = vpop.f32.mrb[0].mxu0
    %v424 = vadd.f32 0.0, %v423
    %v425 = vpop.f32.mrb[0].mxu0
    %v426 = vadd.f32 0.0, %v425
    %427 = vmatprep.mubr.f32.mxu0 0.0
    %428 = vmatmul.mubr.f32.gmra.mrb[0].mxu0 %v339
    %v429 = vpop.f32.mrb[0].mxu0
    %v430 = vadd.f32 0.0, %v429
    %v431 = vpop.f32.mrb[0].mxu0
    %v432 = vadd.f32 0.0, %v431
    %433 = vmatprep.mubr.f32.mxu0 0.0
    %434 = vmatmul.mubr.f32.gmra.mrb[0].mxu0 %v342
    %v435 = vpop.f32.mrb[0].mxu0
    %v436 = vadd.f32 0.0, %v435
    %v437 = vpop.f32.mrb[0].mxu0
    %v438 = vadd.f32 0.0, %v437
    %439 = vdwg.mxu0
    %s440 = scalar_lea.vmem %s4, 80
    %v441 = vld [vmem:[%s440] sm:$0xff]
    %v442 = vld [vmem:[%s440 + $0x8] sm:$0xff]
    %v443 = vld [vmem:[%s440 + $0x10] sm:$0xff]
    %v444 = vld [vmem:[%s440 + $0x18] sm:$0xff]
    %v445 = vld [vmem:[%s440 + $0x20] sm:$0xff]
    %v446 = vld [vmem:[%s440 + $0x28] sm:$0xff]
    %v447 = vld [vmem:[%s440 + $0x30] sm:$0xff]
    %v448 = vld [vmem:[%s440 + $0x38] sm:$0xff]
    %v449 = vld [vmem:[%s440 + $0x40] sm:$0xf]
    %v450 = vld [vmem:[%s440 + $0x48] sm:$0xf]
    %v452 = vsel %vm344, %v449, 0
    %v455 = vsel %vm344, %v450, 0
    %457 = vmatprep.subr.mxu0 %v442
    %458 = vmatpush1.msra.mxu0 %v441
    %459 = vmatprep.subr.mxu0 %v444
    %460 = vmatpush1.msra.mxu0 %v443
    %461 = vmatprep.subr.mxu0 %v446
    %462 = vmatpush1.msra.mxu0 %v445
    %463 = vmatprep.subr.mxu0 %v448
    %464 = vmatpush1.msra.mxu0 %v447
    %465 = vmatprep.subr.mxu0 %v455
    %466 = vmatpush1.msra.mxu0 %v452
    %467 = vmatprep.subr.mxu0 0.0
    %468 = vmatpush1.msra.mxu0 0.0
    %469 = vmatprep.subr.mxu0 0.0
    %470 = vmatpush1.msra.mxu0 0.0
    %471 = vmatprep.subr.mxu0 0.0
    %472 = vmatpush1.msra.mxu0 0.0
    %473 = vmatprep.subr.mxu0 0.0
    %474 = vmatpush1.msra.mxu0 0.0
    %475 = vmatprep.subr.mxu0 0.0
    %476 = vmatpush1.msra.mxu0 0.0
    %477 = vmatprep.subr.mxu0 0.0
    %478 = vmatpush1.msra.mxu0 0.0
    %479 = vmatprep.subr.mxu0 0.0
    %480 = vmatpush1.msra.mxu0 0.0
    %481 = vmatprep.subr.mxu0 0.0
    %482 = vmatpush1.msra.mxu0 0.0
    %483 = vmatprep.subr.mxu0 0.0
    %484 = vmatpush1.msra.mxu0 0.0
    %485 = vmatprep.subr.mxu0 0.0
    %486 = vmatpush1.msra.mxu0 0.0
    %487 = vmatprep.subr.mxu0 0.0
    %488 = vmatpush1.msra.mxu0 0.0
    %489 = vmatprep.subr.mxu0 0.0
    %490 = vmatpush1.msra.mxu0 0.0
    %491 = vmatprep.subr.mxu0 0.0
    %492 = vmatpush1.msra.mxu0 0.0
    %493 = vmatprep.subr.mxu0 0.0
    %494 = vmatpush1.msra.mxu0 0.0
    %495 = vmatprep.subr.mxu0 0.0
    %496 = vmatpush1.msra.mxu0 0.0
    %497 = vmatprep.subr.mxu0 0.0
    %498 = vmatpush1.msra.mxu0 0.0
    %499 = vmatprep.subr.mxu0 0.0
    %500 = vmatpush1.msra.mxu0 0.0
    %501 = vmatprep.subr.mxu0 0.0
    %502 = vmatpush1.msra.mxu0 0.0
    %503 = vmatprep.subr.mxu0 0.0
    %504 = vmatpush1.msra.mxu0 0.0
    %505 = vmatprep.subr.mxu0 0.0
    %506 = vmatpush1.msra.mxu0 0.0
    %507 = vmatprep.subr.mxu0 0.0
    %508 = vmatpush1.msra.mxu0 0.0
    %509 = vmatprep.subr.mxu0 0.0
    %510 = vmatpush1.msra.mxu0 0.0
    %511 = vmatprep.subr.mxu0 0.0
    %512 = vmatpush1.msra.mxu0 0.0
    %513 = vmatprep.subr.mxu0 0.0
    %514 = vmatpush1.msra.mxu0 0.0
    %515 = vmatprep.subr.mxu0 0.0
    %516 = vmatpush1.msra.mxu0 0.0
    %517 = vmatprep.subr.mxu0 0.0
    %518 = vmatpush1.msra.mxu0 0.0
    %519 = vmatprep.subr.mxu0 0.0
    %520 = vmatpush1.msra.mxu0 0.0
    %521 = vmatprep.mubr.f32.mxu0 0.0
    %522 = vmatmul.mubr.f32.gmra.mrb[0].mxu0 %v333
    %v523 = vpop.f32.mrb[0].mxu0
    %v524 = vadd.f32 0.0, %v523
    %v525 = vpop.f32.mrb[0].mxu0
    %v526 = vadd.f32 0.0, %v525
    %527 = vmatprep.mubr.f32.mxu0 0.0
    %528 = vmatmul.mubr.f32.gmra.mrb[0].mxu0 %v336
    %v529 = vpop.f32.mrb[0].mxu0
    %v530 = vadd.f32 0.0, %v529
    %v531 = vpop.f32.mrb[0].mxu0
    %v532 = vadd.f32 0.0, %v531
    %533 = vmatprep.mubr.f32.mxu0 0.0
    %534 = vmatmul.mubr.f32.gmra.mrb[0].mxu0 %v339
    %v535 = vpop.f32.mrb[0].mxu0
    %v536 = vadd.f32 0.0, %v535
    %v537 = vpop.f32.mrb[0].mxu0
    %v538 = vadd.f32 0.0, %v537
    %539 = vmatprep.mubr.f32.mxu0 0.0
    %540 = vmatmul.mubr.f32.gmra.mrb[0].mxu0 %v342
    %v541 = vpop.f32.mrb[0].mxu0
    %v542 = vadd.f32 0.0, %v541
    %v543 = vpop.f32.mrb[0].mxu0
    %v544 = vadd.f32 0.0, %v543
    %545 = vdwg.mxu0
    %s546 = scalar_lea.vmem %s3, 160
    %v547 = vld [vmem:[%s546] sm:$0xff]
    %v548 = vld [vmem:[%s546 + $0x8] sm:$0xff]
    %v549 = vld [vmem:[%s546 + $0x10] sm:$0xff]
    %v550 = vld [vmem:[%s546 + $0x18] sm:$0xff]
    %v551 = vld [vmem:[%s546 + $0x20] sm:$0xff]
    %v552 = vld [vmem:[%s546 + $0x28] sm:$0xff]
    %v553 = vld [vmem:[%s546 + $0x30] sm:$0xff]
    %v554 = vld [vmem:[%s546 + $0x38] sm:$0xff]
    %v555 = vld [vmem:[%s546 + $0x40] sm:$0xf]
    %v556 = vld [vmem:[%s546 + $0x48] sm:$0xf]
    %s557 = scalar_lea.vmem %s4, 160
    %v558 = vld [vmem:[%s557] sm:$0xff]
    %v559 = vld [vmem:[%s557 + $0x8] sm:$0xff]
    %v560 = vld [vmem:[%s557 + $0x10] sm:$0xff]
    %v561 = vld [vmem:[%s557 + $0x18] sm:$0xff]
    %v562 = vld [vmem:[%s557 + $0x20] sm:$0xff]
    %v563 = vld [vmem:[%s557 + $0x28] sm:$0xff]
    %v564 = vld [vmem:[%s557 + $0x30] sm:$0xff]
    %v565 = vld [vmem:[%s557 + $0x38] sm:$0xff]
    %v566 = vld [vmem:[%s557 + $0x40] sm:$0xf]
    %v567 = vld [vmem:[%s557 + $0x48] sm:$0xf]
    %s568 = scalar_lea.vmem %s3, 240
    %v569 = vld [vmem:[%s568] sm:$0xff]
    %v570 = vld [vmem:[%s568 + $0x8] sm:$0xff]
    %v571 = vld [vmem:[%s568 + $0x10] sm:$0xff]
    %v572 = vld [vmem:[%s568 + $0x18] sm:$0xff]
    %v573 = vld [vmem:[%s568 + $0x20] sm:$0xff]
    %v574 = vld [vmem:[%s568 + $0x28] sm:$0xff]
    %v575 = vld [vmem:[%s568 + $0x30] sm:$0xff]
    %v576 = vld [vmem:[%s568 + $0x38] sm:$0xff]
    %v577 = vld [vmem:[%s568 + $0x40] sm:$0xf]
    %v578 = vld [vmem:[%s568 + $0x48] sm:$0xf]
    %v580 = vsel %vm331, %v282, 0
    %v583 = vsel %vm331, %v287, 0
    %v586 = vsel %vm331, %v292, 0
    %v589 = vsel %vm331, %v297, 0
    %v592 = vsel %vm344, %v577, 0
    %v595 = vsel %vm344, %v578, 0
    %597 = vmatprep.subr.mxu0 %v570
    %598 = vmatpush1.msra.mxu0 %v569
    %599 = vmatprep.subr.mxu0 %v572
    %600 = vmatpush1.msra.mxu0 %v571
    %601 = vmatprep.subr.mxu0 %v574
    %602 = vmatpush1.msra.mxu0 %v573
    %603 = vmatprep.subr.mxu0 %v576
    %604 = vmatpush1.msra.mxu0 %v575
    %605 = vmatprep.subr.mxu0 %v595
    %606 = vmatpush1.msra.mxu0 %v592
    %607 = vmatprep.subr.mxu0 0.0
    %608 = vmatpush1.msra.mxu0 0.0
    %609 = vmatprep.subr.mxu0 0.0
    %610 = vmatpush1.msra.mxu0 0.0
    %611 = vmatprep.subr.mxu0 0.0
    %612 = vmatpush1.msra.mxu0 0.0
    %613 = vmatprep.subr.mxu0 0.0
    %614 = vmatpush1.msra.mxu0 0.0
    %615 = vmatprep.subr.mxu0 0.0
    %616 = vmatpush1.msra.mxu0 0.0
    %617 = vmatprep.subr.mxu0 0.0
    %618 = vmatpush1.msra.mxu0 0.0
    %619 = vmatprep.subr.mxu0 0.0
    %620 = vmatpush1.msra.mxu0 0.0
    %621 = vmatprep.subr.mxu0 0.0
    %622 = vmatpush1.msra.mxu0 0.0
    %623 = vmatprep.subr.mxu0 0.0
    %624 = vmatpush1.msra.mxu0 0.0
    %625 = vmatprep.subr.mxu0 0.0
    %626 = vmatpush1.msra.mxu0 0.0
    %627 = vmatprep.subr.mxu0 0.0
    %628 = vmatpush1.msra.mxu0 0.0
    %629 = vmatprep.subr.mxu0 0.0
    %630 = vmatpush1.msra.mxu0 0.0
    %631 = vmatprep.subr.mxu0 0.0
    %632 = vmatpush1.msra.mxu0 0.0
    %633 = vmatprep.subr.mxu0 0.0
    %634 = vmatpush1.msra.mxu0 0.0
    %635 = vmatprep.subr.mxu0 0.0
    %636 = vmatpush1.msra.mxu0 0.0
    %637 = vmatprep.subr.mxu0 0.0
    %638 = vmatpush1.msra.mxu0 0.0
    %639 = vmatprep.subr.mxu0 0.0
    %640 = vmatpush1.msra.mxu0 0.0
    %641 = vmatprep.subr.mxu0 0.0
    %642 = vmatpush1.msra.mxu0 0.0
    %643 = vmatprep.subr.mxu0 0.0
    %644 = vmatpush1.msra.mxu0 0.0
    %645 = vmatprep.subr.mxu0 0.0
    %646 = vmatpush1.msra.mxu0 0.0
    %647 = vmatprep.subr.mxu0 0.0
    %648 = vmatpush1.msra.mxu0 0.0
    %649 = vmatprep.subr.mxu0 0.0
    %650 = vmatpush1.msra.mxu0 0.0
    %651 = vmatprep.subr.mxu0 0.0
    %652 = vmatpush1.msra.mxu0 0.0
    %653 = vmatprep.subr.mxu0 0.0
    %654 = vmatpush1.msra.mxu0 0.0
    %655 = vmatprep.subr.mxu0 0.0
    %656 = vmatpush1.msra.mxu0 0.0
    %657 = vmatprep.subr.mxu0 0.0
    %658 = vmatpush1.msra.mxu0 0.0
    %659 = vmatprep.subr.mxu0 0.0
    %660 = vmatpush1.msra.mxu0 0.0
    %661 = vmatprep.mubr.f32.mxu0 0.0
    %662 = vmatmul.mubr.f32.gmra.mrb[0].mxu0 %v580
    %v663 = vpop.f32.mrb[0].mxu0
    %v664 = vadd.f32 0.0, %v663
    %v665 = vpop.f32.mrb[0].mxu0
    %v666 = vadd.f32 0.0, %v665
    %667 = vmatprep.mubr.f32.mxu0 0.0
    %668 = vmatmul.mubr.f32.gmra.mrb[0].mxu0 %v583
    %v669 = vpop.f32.mrb[0].mxu0
    %v670 = vadd.f32 0.0, %v669
    %v671 = vpop.f32.mrb[0].mxu0
    %v672 = vadd.f32 0.0, %v671
    %673 = vmatprep.mubr.f32.mxu0 0.0
    %674 = vmatmul.mubr.f32.gmra.mrb[0].mxu0 %v586
    %v675 = vpop.f32.mrb[0].mxu0
    %v676 = vadd.f32 0.0, %v675
    %v677 = vpop.f32.mrb[0].mxu0
    %v678 = vadd.f32 0.0, %v677
    %679 = vmatprep.mubr.f32.mxu0 0.0
    %680 = vmatmul.mubr.f32.gmra.mrb[0].mxu0 %v589
    %v681 = vpop.f32.mrb[0].mxu0
    %v682 = vadd.f32 0.0, %v681
    %v683 = vpop.f32.mrb[0].mxu0
    %v684 = vadd.f32 0.0, %v683
    %685 = vdwg.mxu0
    %s686 = scalar_lea.vmem %s4, 240
    %v687 = vld [vmem:[%s686] sm:$0xff]
    %v688 = vld [vmem:[%s686 + $0x8] sm:$0xff]
    %v689 = vld [vmem:[%s686 + $0x10] sm:$0xff]
    %v690 = vld [vmem:[%s686 + $0x18] sm:$0xff]
    %v691 = vld [vmem:[%s686 + $0x20] sm:$0xff]
    %v692 = vld [vmem:[%s686 + $0x28] sm:$0xff]
    %v693 = vld [vmem:[%s686 + $0x30] sm:$0xff]
    %v694 = vld [vmem:[%s686 + $0x38] sm:$0xff]
    %v695 = vld [vmem:[%s686 + $0x40] sm:$0xf]
    %v696 = vld [vmem:[%s686 + $0x48] sm:$0xf]
    %v698 = vsel %vm344, %v695, 0
    %v701 = vsel %vm344, %v696, 0
    %703 = vmatprep.subr.mxu0 %v688
    %704 = vmatpush1.msra.mxu0 %v687
    %705 = vmatprep.subr.mxu0 %v690
    %706 = vmatpush1.msra.mxu0 %v689
    %707 = vmatprep.subr.mxu0 %v692
    %708 = vmatpush1.msra.mxu0 %v691
    %709 = vmatprep.subr.mxu0 %v694
    %710 = vmatpush1.msra.mxu0 %v693
    %711 = vmatprep.subr.mxu0 %v701
    %712 = vmatpush1.msra.mxu0 %v698
    %713 = vmatprep.subr.mxu0 0.0
    %714 = vmatpush1.msra.mxu0 0.0
    %715 = vmatprep.subr.mxu0 0.0
    %716 = vmatpush1.msra.mxu0 0.0
    %717 = vmatprep.subr.mxu0 0.0
    %718 = vmatpush1.msra.mxu0 0.0
    %719 = vmatprep.subr.mxu0 0.0
    %720 = vmatpush1.msra.mxu0 0.0
    %721 = vmatprep.subr.mxu0 0.0
    %722 = vmatpush1.msra.mxu0 0.0
    %723 = vmatprep.subr.mxu0 0.0
    %724 = vmatpush1.msra.mxu0 0.0
    %725 = vmatprep.subr.mxu0 0.0
    %726 = vmatpush1.msra.mxu0 0.0
    %727 = vmatprep.subr.mxu0 0.0
    %728 = vmatpush1.msra.mxu0 0.0
    %729 = vmatprep.subr.mxu0 0.0
    %730 = vmatpush1.msra.mxu0 0.0
    %731 = vmatprep.subr.mxu0 0.0
    %732 = vmatpush1.msra.mxu0 0.0
    %733 = vmatprep.subr.mxu0 0.0
    %734 = vmatpush1.msra.mxu0 0.0
    %735 = vmatprep.subr.mxu0 0.0
    %736 = vmatpush1.msra.mxu0 0.0
    %737 = vmatprep.subr.mxu0 0.0
    %738 = vmatpush1.msra.mxu0 0.0
    %739 = vmatprep.subr.mxu0 0.0
    %740 = vmatpush1.msra.mxu0 0.0
    %741 = vmatprep.subr.mxu0 0.0
    %742 = vmatpush1.msra.mxu0 0.0
    %743 = vmatprep.subr.mxu0 0.0
    %744 = vmatpush1.msra.mxu0 0.0
    %745 = vmatprep.subr.mxu0 0.0
    %746 = vmatpush1.msra.mxu0 0.0
    %747 = vmatprep.subr.mxu0 0.0
    %748 = vmatpush1.msra.mxu0 0.0
    %749 = vmatprep.subr.mxu0 0.0
    %750 = vmatpush1.msra.mxu0 0.0
    %751 = vmatprep.subr.mxu0 0.0
    %752 = vmatpush1.msra.mxu0 0.0
    %753 = vmatprep.subr.mxu0 0.0
    %754 = vmatpush1.msra.mxu0 0.0
    %755 = vmatprep.subr.mxu0 0.0
    %756 = vmatpush1.msra.mxu0 0.0
    %757 = vmatprep.subr.mxu0 0.0
    %758 = vmatpush1.msra.mxu0 0.0
    %759 = vmatprep.subr.mxu0 0.0
    %760 = vmatpush1.msra.mxu0 0.0
    %761 = vmatprep.subr.mxu0 0.0
    %762 = vmatpush1.msra.mxu0 0.0
    %763 = vmatprep.subr.mxu0 0.0
    %764 = vmatpush1.msra.mxu0 0.0
    %765 = vmatprep.subr.mxu0 0.0
    %766 = vmatpush1.msra.mxu0 0.0
    %767 = vmatprep.mubr.f32.mxu0 0.0
    %768 = vmatmul.mubr.f32.gmra.mrb[0].mxu0 %v580
    %v769 = vpop.f32.mrb[0].mxu0
    %v770 = vadd.f32 0.0, %v769
    %v771 = vpop.f32.mrb[0].mxu0
    %v772 = vadd.f32 0.0, %v771
    %773 = vmatprep.mubr.f32.mxu0 0.0
    %774 = vmatmul.mubr.f32.gmra.mrb[0].mxu0 %v583
    %v775 = vpop.f32.mrb[0].mxu0
    %v776 = vadd.f32 0.0, %v775
    %v777 = vpop.f32.mrb[0].mxu0
    %v778 = vadd.f32 0.0, %v777
    %779 = vmatprep.mubr.f32.mxu0 0.0
    %780 = vmatmul.mubr.f32.gmra.mrb[0].mxu0 %v586
    %v781 = vpop.f32.mrb[0].mxu0
    %v782 = vadd.f32 0.0, %v781
    %v783 = vpop.f32.mrb[0].mxu0
    %v784 = vadd.f32 0.0, %v783
    %785 = vmatprep.mubr.f32.mxu0 0.0
    %786 = vmatmul.mubr.f32.gmra.mrb[0].mxu0 %v589
    %v787 = vpop.f32.mrb[0].mxu0
    %v788 = vadd.f32 0.0, %v787
    %v789 = vpop.f32.mrb[0].mxu0
    %v790 = vadd.f32 0.0, %v789
    %791 = vdwg.mxu0
    %v793 = vsel %vm331, %v222, 0
    %v796 = vsel %vm331, %v227, 0
    %v799 = vsel %vm331, %v232, 0
    %v802 = vsel %vm331, %v237, 0
    %v805 = vsel %vm344, %v308, 0
    %v808 = vsel %vm344, %v309, 0
    %810 = vmatprep.subr.mxu0 %v301
    %811 = vmatpush1.msra.mxu0 %v300
    %812 = vmatprep.subr.mxu0 %v303
    %813 = vmatpush1.msra.mxu0 %v302
    %814 = vmatprep.subr.mxu0 %v305
    %815 = vmatpush1.msra.mxu0 %v304
    %816 = vmatprep.subr.mxu0 %v307
    %817 = vmatpush1.msra.mxu0 %v306
    %818 = vmatprep.subr.mxu0 %v808
    %819 = vmatpush1.msra.mxu0 %v805
    %820 = vmatprep.subr.mxu0 0.0
    %821 = vmatpush1.msra.mxu0 0.0
    %822 = vmatprep.subr.mxu0 0.0
    %823 = vmatpush1.msra.mxu0 0.0
    %824 = vmatprep.subr.mxu0 0.0
    %825 = vmatpush1.msra.mxu0 0.0
    %826 = vmatprep.subr.mxu0 0.0
    %827 = vmatpush1.msra.mxu0 0.0
    %828 = vmatprep.subr.mxu0 0.0
    %829 = vmatpush1.msra.mxu0 0.0
    %830 = vmatprep.subr.mxu0 0.0
    %831 = vmatpush1.msra.mxu0 0.0
    %832 = vmatprep.subr.mxu0 0.0
    %833 = vmatpush1.msra.mxu0 0.0
    %834 = vmatprep.subr.mxu0 0.0
    %835 = vmatpush1.msra.mxu0 0.0
    %836 = vmatprep.subr.mxu0 0.0
    %837 = vmatpush1.msra.mxu0 0.0
    %838 = vmatprep.subr.mxu0 0.0
    %839 = vmatpush1.msra.mxu0 0.0
    %840 = vmatprep.subr.mxu0 0.0
    %841 = vmatpush1.msra.mxu0 0.0
    %842 = vmatprep.subr.mxu0 0.0
    %843 = vmatpush1.msra.mxu0 0.0
    %844 = vmatprep.subr.mxu0 0.0
    %845 = vmatpush1.msra.mxu0 0.0
    %846 = vmatprep.subr.mxu0 0.0
    %847 = vmatpush1.msra.mxu0 0.0
    %848 = vmatprep.subr.mxu0 0.0
    %849 = vmatpush1.msra.mxu0 0.0
    %850 = vmatprep.subr.mxu0 0.0
    %851 = vmatpush1.msra.mxu0 0.0
    %852 = vmatprep.subr.mxu0 0.0
    %853 = vmatpush1.msra.mxu0 0.0
    %854 = vmatprep.subr.mxu0 0.0
    %855 = vmatpush1.msra.mxu0 0.0
    %856 = vmatprep.subr.mxu0 0.0
    %857 = vmatpush1.msra.mxu0 0.0
    %858 = vmatprep.subr.mxu0 0.0
    %859 = vmatpush1.msra.mxu0 0.0
    %860 = vmatprep.subr.mxu0 0.0
    %861 = vmatpush1.msra.mxu0 0.0
    %862 = vmatprep.subr.mxu0 0.0
    %863 = vmatpush1.msra.mxu0 0.0
    %864 = vmatprep.subr.mxu0 0.0
    %865 = vmatpush1.msra.mxu0 0.0
    %866 = vmatprep.subr.mxu0 0.0
    %867 = vmatpush1.msra.mxu0 0.0
    %868 = vmatprep.subr.mxu0 0.0
    %869 = vmatpush1.msra.mxu0 0.0
    %870 = vmatprep.subr.mxu0 0.0
    %871 = vmatpush1.msra.mxu0 0.0
    %872 = vmatprep.subr.mxu0 0.0
    %873 = vmatpush1.msra.mxu0 0.0
    %874 = vmatprep.mubr.f32.mxu0 0.0
    %875 = vmatmul.mubr.f32.gmra.mrb[0].mxu0 %v793
    %v876 = vpop.f32.mrb[0].mxu0
    %v877 = vadd.f32 %v418, %v876
    %v878 = vpop.f32.mrb[0].mxu0
    %v879 = vadd.f32 %v420, %v878
    %880 = vmatprep.mubr.f32.mxu0 0.0
    %881 = vmatmul.mubr.f32.gmra.mrb[0].mxu0 %v796
    %v882 = vpop.f32.mrb[0].mxu0
    %v883 = vadd.f32 %v424, %v882
    %v884 = vpop.f32.mrb[0].mxu0
    %v885 = vadd.f32 %v426, %v884
    %886 = vmatprep.mubr.f32.mxu0 0.0
    %887 = vmatmul.mubr.f32.gmra.mrb[0].mxu0 %v799
    %v888 = vpop.f32.mrb[0].mxu0
    %v889 = vadd.f32 %v430, %v888
    %v890 = vpop.f32.mrb[0].mxu0
    %v891 = vadd.f32 %v432, %v890
    %892 = vmatprep.mubr.f32.mxu0 0.0
    %893 = vmatmul.mubr.f32.gmra.mrb[0].mxu0 %v802
    %v894 = vpop.f32.mrb[0].mxu0
    %v895 = vadd.f32 %v436, %v894
    %v896 = vpop.f32.mrb[0].mxu0
    %v897 = vadd.f32 %v438, %v896
    %898 = vdwg.mxu0
    %v900 = vsel %vm331, %v262, 0
    %v903 = vsel %vm331, %v267, 0
    %v906 = vsel %vm331, %v272, 0
    %v909 = vsel %vm331, %v277, 0
    %v912 = vsel %vm344, %v555, 0
    %v915 = vsel %vm344, %v556, 0
    %917 = vmatprep.subr.mxu0 %v548
    %918 = vmatpush1.msra.mxu0 %v547
    %919 = vmatprep.subr.mxu0 %v550
    %920 = vmatpush1.msra.mxu0 %v549
    %921 = vmatprep.subr.mxu0 %v552
    %922 = vmatpush1.msra.mxu0 %v551
    %923 = vmatprep.subr.mxu0 %v554
    %924 = vmatpush1.msra.mxu0 %v553
    %925 = vmatprep.subr.mxu0 %v915
    %926 = vmatpush1.msra.mxu0 %v912
    %927 = vmatprep.subr.mxu0 0.0
    %928 = vmatpush1.msra.mxu0 0.0
    %929 = vmatprep.subr.mxu0 0.0
    %930 = vmatpush1.msra.mxu0 0.0
    %931 = vmatprep.subr.mxu0 0.0
    %932 = vmatpush1.msra.mxu0 0.0
    %933 = vmatprep.subr.mxu0 0.0
    %934 = vmatpush1.msra.mxu0 0.0
    %935 = vmatprep.subr.mxu0 0.0
    %936 = vmatpush1.msra.mxu0 0.0
    %937 = vmatprep.subr.mxu0 0.0
    %938 = vmatpush1.msra.mxu0 0.0
    %939 = vmatprep.subr.mxu0 0.0
    %940 = vmatpush1.msra.mxu0 0.0
    %941 = vmatprep.subr.mxu0 0.0
    %942 = vmatpush1.msra.mxu0 0.0
    %943 = vmatprep.subr.mxu0 0.0
    %944 = vmatpush1.msra.mxu0 0.0
    %945 = vmatprep.subr.mxu0 0.0
    %946 = vmatpush1.msra.mxu0 0.0
    %947 = vmatprep.subr.mxu0 0.0
    %948 = vmatpush1.msra.mxu0 0.0
    %949 = vmatprep.subr.mxu0 0.0
    %950 = vmatpush1.msra.mxu0 0.0
    %951 = vmatprep.subr.mxu0 0.0
    %952 = vmatpush1.msra.mxu0 0.0
    %953 = vmatprep.subr.mxu0 0.0
    %954 = vmatpush1.msra.mxu0 0.0
    %955 = vmatprep.subr.mxu0 0.0
    %956 = vmatpush1.msra.mxu0 0.0
    %957 = vmatprep.subr.mxu0 0.0
    %958 = vmatpush1.msra.mxu0 0.0
    %959 = vmatprep.subr.mxu0 0.0
    %960 = vmatpush1.msra.mxu0 0.0
    %961 = vmatprep.subr.mxu0 0.0
    %962 = vmatpush1.msra.mxu0 0.0
    %963 = vmatprep.subr.mxu0 0.0
    %964 = vmatpush1.msra.mxu0 0.0
    %965 = vmatprep.subr.mxu0 0.0
    %966 = vmatpush1.msra.mxu0 0.0
    %967 = vmatprep.subr.mxu0 0.0
    %968 = vmatpush1.msra.mxu0 0.0
    %969 = vmatprep.subr.mxu0 0.0
    %970 = vmatpush1.msra.mxu0 0.0
    %971 = vmatprep.subr.mxu0 0.0
    %972 = vmatpush1.msra.mxu0 0.0
    %973 = vmatprep.subr.mxu0 0.0
    %974 = vmatpush1.msra.mxu0 0.0
    %975 = vmatprep.subr.mxu0 0.0
    %976 = vmatpush1.msra.mxu0 0.0
    %977 = vmatprep.subr.mxu0 0.0
    %978 = vmatpush1.msra.mxu0 0.0
    %979 = vmatprep.subr.mxu0 0.0
    %980 = vmatpush1.msra.mxu0 0.0
    %981 = vmatprep.mubr.f32.mxu0 0.0
    %982 = vmatmul.mubr.f32.gmra.mrb[0].mxu0 %v900
    %v983 = vpop.f32.mrb[0].mxu0
    %v984 = vadd.f32 %v664, %v983
    %v985 = vpop.f32.mrb[0].mxu0
    %v986 = vadd.f32 %v666, %v985
    %987 = vmatprep.mubr.f32.mxu0 0.0
    %988 = vmatmul.mubr.f32.gmra.mrb[0].mxu0 %v903
    %v989 = vpop.f32.mrb[0].mxu0
    %v990 = vadd.f32 %v670, %v989
    %v991 = vpop.f32.mrb[0].mxu0
    %v992 = vadd.f32 %v672, %v991
    %993 = vmatprep.mubr.f32.mxu0 0.0
    %994 = vmatmul.mubr.f32.gmra.mrb[0].mxu0 %v906
    %v995 = vpop.f32.mrb[0].mxu0
    %v996 = vadd.f32 %v676, %v995
    %v997 = vpop.f32.mrb[0].mxu0
    %v998 = vadd.f32 %v678, %v997
    %999 = vmatprep.mubr.f32.mxu0 0.0
    %1000 = vmatmul.mubr.f32.gmra.mrb[0].mxu0 %v909
    %v1001 = vpop.f32.mrb[0].mxu0
    %v1002 = vadd.f32 %v682, %v1001
    %v1003 = vpop.f32.mrb[0].mxu0
    %v1004 = vadd.f32 %v684, %v1003
    %1005 = vdwg.mxu0
    %v1006 = vadd.f32 %v877, %v984
    %v1007 = vadd.f32 %v879, %v986
    %v1008 = vadd.f32 %v883, %v990
    %v1009 = vadd.f32 %v885, %v992
    %v1010 = vadd.f32 %v889, %v996
    %v1011 = vadd.f32 %v891, %v998
    %v1012 = vadd.f32 %v895, %v1002
    %v1013 = vadd.f32 %v897, %v1004
    %v1014 = vld [vmem:[%s7] sm:$0xff]
    %v1015 = vld [vmem:[%s7 + $0x8] sm:$0xff]
    %v1016 = vld [vmem:[%s7 + $0x10] sm:$0xff]
    %v1017 = vld [vmem:[%s7 + $0x18] sm:$0xff]
    %v1018 = vmul.f32 %v1006, %v50
    %v1019 = vmul.f32 %v1007, %v51
    %v1020 = vmul.f32 %v1008, %v52
    %v1021 = vmul.f32 %v1009, %v53
    %v1022 = vmul.f32 %v1010, %v54
    %v1023 = vmul.f32 %v1011, %v55
    %v1024 = vmul.f32 %v1012, %v56
    %v1025 = vmul.f32 %v1013, %v57
    %1026 = vmatprep.subr.mxu0 0.0
    %1027 = vmatpush1.msra.mxu0 %v58
    %1028 = vmatprep.subr.mxu0 0.0
    %1029 = vmatpush1.msra.mxu0 %v59
    %1030 = vmatprep.subr.mxu0 0.0
    %1031 = vmatpush1.msra.mxu0 %v60
    %1032 = vmatprep.subr.mxu0 0.0
    %1033 = vmatpush1.msra.mxu0 %v61
    %1034 = vmatprep.subr.mxu0 0.0
    %1035 = vmatpush1.msra.mxu0 %v62
    %1036 = vmatprep.subr.mxu0 0.0
    %1037 = vmatpush1.msra.mxu0 %v63
    %1038 = vmatprep.subr.mxu0 0.0
    %1039 = vmatpush1.msra.mxu0 %v64
    %1040 = vmatprep.subr.mxu0 0.0
    %1041 = vmatpush1.msra.mxu0 %v65
    %1042 = vmatprep.subr.mxu0 0.0
    %1043 = vmatpush1.msra.mxu0 %v66
    %1044 = vmatprep.subr.mxu0 0.0
    %1045 = vmatpush1.msra.mxu0 %v67
    %1046 = vmatprep.subr.mxu0 0.0
    %1047 = vmatpush1.msra.mxu0 %v68
    %1048 = vmatprep.subr.mxu0 0.0
    %1049 = vmatpush1.msra.mxu0 %v69
    %1050 = vmatprep.subr.mxu0 0.0
    %1051 = vmatpush1.msra.mxu0 %v70
    %1052 = vmatprep.subr.mxu0 0.0
    %1053 = vmatpush1.msra.mxu0 %v71
    %1054 = vmatprep.subr.mxu0 0.0
    %1055 = vmatpush1.msra.mxu0 %v72
    %1056 = vmatprep.subr.mxu0 0.0
    %1057 = vmatpush1.msra.mxu0 %v73
    %1058 = vmatprep.subr.mxu0 0.0
    %1059 = vmatpush1.msra.mxu0 %v74
    %1060 = vmatprep.subr.mxu0 0.0
    %1061 = vmatpush1.msra.mxu0 %v75
    %1062 = vmatprep.subr.mxu0 0.0
    %1063 = vmatpush1.msra.mxu0 %v76
    %1064 = vmatprep.subr.mxu0 0.0
    %1065 = vmatpush1.msra.mxu0 %v77
    %1066 = vmatprep.subr.mxu0 0.0
    %1067 = vmatpush1.msra.mxu0 %v78
    %1068 = vmatprep.subr.mxu0 0.0
    %1069 = vmatpush1.msra.mxu0 %v79
    %1070 = vmatprep.subr.mxu0 0.0
    %1071 = vmatpush1.msra.mxu0 %v80
    %1072 = vmatprep.subr.mxu0 0.0
    %1073 = vmatpush1.msra.mxu0 %v81
    %1074 = vmatprep.subr.mxu0 0.0
    %1075 = vmatpush1.msra.mxu0 %v82
    %1076 = vmatprep.subr.mxu0 0.0
    %1077 = vmatpush1.msra.mxu0 %v83
    %1078 = vmatprep.subr.mxu0 0.0
    %1079 = vmatpush1.msra.mxu0 %v84
    %1080 = vmatprep.subr.mxu0 0.0
    %1081 = vmatpush1.msra.mxu0 %v85
    %1082 = vmatprep.subr.mxu0 0.0
    %1083 = vmatpush1.msra.mxu0 %v86
    %1084 = vmatprep.subr.mxu0 0.0
    %1085 = vmatpush1.msra.mxu0 %v87
    %1086 = vmatprep.subr.mxu0 0.0
    %1087 = vmatpush1.msra.mxu0 %v88
    %1088 = vmatprep.subr.mxu0 0.0
    %1089 = vmatpush1.msra.mxu0 %v89
    %1090 = vmatprep.mubr.f32.mxu0 %v1019
    %1091 = vmatmul.mubr.f32.gmra.mrb[0].mxu0 %v1018
    %v1092 = vpop.f32.mrb[0].mxu0
    %v1093 = vadd.f32 %v1014, %v1092
    %v1094 = vpop.f32.mrb[0].mxu0
    %1095 = vmatprep.mubr.f32.mxu0 %v1021
    %1096 = vmatmul.mubr.f32.gmra.mrb[0].mxu0 %v1020
    %v1097 = vpop.f32.mrb[0].mxu0
    %v1098 = vadd.f32 %v1015, %v1097
    %v1099 = vpop.f32.mrb[0].mxu0
    %1100 = vmatprep.mubr.f32.mxu0 %v1023
    %1101 = vmatmul.mubr.f32.gmra.mrb[0].mxu0 %v1022
    %v1102 = vpop.f32.mrb[0].mxu0
    %v1103 = vadd.f32 %v1016, %v1102
    %v1104 = vpop.f32.mrb[0].mxu0
    %1105 = vmatprep.mubr.f32.mxu0 %v1025
    %1106 = vmatmul.mubr.f32.gmra.mrb[0].mxu0 %v1024
    %v1107 = vpop.f32.mrb[0].mxu0
    %v1108 = vadd.f32 %v1017, %v1107
    %v1109 = vpop.f32.mrb[0].mxu0
    %1110 = vdwg.mxu0
    %v1111 = vxor.u32 %v1093, 2147483648
    %v1112 = vxor.u32 %v1098, 2147483648
    %v1113 = vxor.u32 %v1103, 2147483648
    %v1114 = vxor.u32 %v1108, 2147483648
    %v1115 = vmul.f32 %v1111, 1.442695
    %v1116 = vpow.pop %v1115
    %v1117 = vmul.f32 %v1112, 1.442695
    %v1118 = vpow.pop %v1117
    %v1119 = vmul.f32 %v1113, 1.442695
    %v1120 = vpow.pop %v1119
    %v1121 = vmul.f32 %v1114, 1.442695
    %v1122 = vpow.pop %v1121
    %v1123 = vadd.f32 %v1116, 1.0
    %v1124 = vadd.f32 %v1118, 1.0
    %v1125 = vadd.f32 %v1120, 1.0
    %v1126 = vadd.f32 %v1122, 1.0
    %v1127 = vrcp.pop %v1123
    %v1128 = vmul.f32 1.0, %v1127
    %v1129 = vrcp.pop %v1124
    %v1130 = vmul.f32 1.0, %v1129
    %v1131 = vrcp.pop %v1125
    %v1132 = vmul.f32 1.0, %v1131
    %v1133 = vrcp.pop %v1126
    %v1134 = vmul.f32 1.0, %v1133
    %v1136 = vsel %vm344, %v318, 0
    %v1139 = vsel %vm344, %v319, 0
    %1141 = vmatprep.subr.mxu0 %v311
    %1142 = vmatpush1.msra.mxu0 %v310
    %1143 = vmatprep.subr.mxu0 %v313
    %1144 = vmatpush1.msra.mxu0 %v312
    %1145 = vmatprep.subr.mxu0 %v315
    %1146 = vmatpush1.msra.mxu0 %v314
    %1147 = vmatprep.subr.mxu0 %v317
    %1148 = vmatpush1.msra.mxu0 %v316
    %1149 = vmatprep.subr.mxu0 %v1139
    %1150 = vmatpush1.msra.mxu0 %v1136
    %1151 = vmatprep.subr.mxu0 0.0
    %1152 = vmatpush1.msra.mxu0 0.0
    %1153 = vmatprep.subr.mxu0 0.0
    %1154 = vmatpush1.msra.mxu0 0.0
    %1155 = vmatprep.subr.mxu0 0.0
    %1156 = vmatpush1.msra.mxu0 0.0
    %1157 = vmatprep.subr.mxu0 0.0
    %1158 = vmatpush1.msra.mxu0 0.0
    %1159 = vmatprep.subr.mxu0 0.0
    %1160 = vmatpush1.msra.mxu0 0.0
    %1161 = vmatprep.subr.mxu0 0.0
    %1162 = vmatpush1.msra.mxu0 0.0
    %1163 = vmatprep.subr.mxu0 0.0
    %1164 = vmatpush1.msra.mxu0 0.0
    %1165 = vmatprep.subr.mxu0 0.0
    %1166 = vmatpush1.msra.mxu0 0.0
    %1167 = vmatprep.subr.mxu0 0.0
    %1168 = vmatpush1.msra.mxu0 0.0
    %1169 = vmatprep.subr.mxu0 0.0
    %1170 = vmatpush1.msra.mxu0 0.0
    %1171 = vmatprep.subr.mxu0 0.0
    %1172 = vmatpush1.msra.mxu0 0.0
    %1173 = vmatprep.subr.mxu0 0.0
    %1174 = vmatpush1.msra.mxu0 0.0
    %1175 = vmatprep.subr.mxu0 0.0
    %1176 = vmatpush1.msra.mxu0 0.0
    %1177 = vmatprep.subr.mxu0 0.0
    %1178 = vmatpush1.msra.mxu0 0.0
    %1179 = vmatprep.subr.mxu0 0.0
    %1180 = vmatpush1.msra.mxu0 0.0
    %1181 = vmatprep.subr.mxu0 0.0
    %1182 = vmatpush1.msra.mxu0 0.0
    %1183 = vmatprep.subr.mxu0 0.0
    %1184 = vmatpush1.msra.mxu0 0.0
    %1185 = vmatprep.subr.mxu0 0.0
    %1186 = vmatpush1.msra.mxu0 0.0
    %1187 = vmatprep.subr.mxu0 0.0
    %1188 = vmatpush1.msra.mxu0 0.0
    %1189 = vmatprep.subr.mxu0 0.0
    %1190 = vmatpush1.msra.mxu0 0.0
    %1191 = vmatprep.subr.mxu0 0.0
    %1192 = vmatpush1.msra.mxu0 0.0
    %1193 = vmatprep.subr.mxu0 0.0
    %1194 = vmatpush1.msra.mxu0 0.0
    %1195 = vmatprep.subr.mxu0 0.0
    %1196 = vmatpush1.msra.mxu0 0.0
    %1197 = vmatprep.subr.mxu0 0.0
    %1198 = vmatpush1.msra.mxu0 0.0
    %1199 = vmatprep.subr.mxu0 0.0
    %1200 = vmatpush1.msra.mxu0 0.0
    %1201 = vmatprep.subr.mxu0 0.0
    %1202 = vmatpush1.msra.mxu0 0.0
    %1203 = vmatprep.subr.mxu0 0.0
    %1204 = vmatpush1.msra.mxu0 0.0
    %1205 = vmatprep.mubr.f32.mxu0 0.0
    %1206 = vmatmul.mubr.f32.gmra.mrb[0].mxu0 %v793
    %v1207 = vpop.f32.mrb[0].mxu0
    %v1208 = vadd.f32 %v524, %v1207
    %v1209 = vpop.f32.mrb[0].mxu0
    %v1210 = vadd.f32 %v526, %v1209
    %1211 = vmatprep.mubr.f32.mxu0 0.0
    %1212 = vmatmul.mubr.f32.gmra.mrb[0].mxu0 %v796
    %v1213 = vpop.f32.mrb[0].mxu0
    %v1214 = vadd.f32 %v530, %v1213
    %v1215 = vpop.f32.mrb[0].mxu0
    %v1216 = vadd.f32 %v532, %v1215
    %1217 = vmatprep.mubr.f32.mxu0 0.0
    %1218 = vmatmul.mubr.f32.gmra.mrb[0].mxu0 %v799
    %v1219 = vpop.f32.mrb[0].mxu0
    %v1220 = vadd.f32 %v536, %v1219
    %v1221 = vpop.f32.mrb[0].mxu0
    %v1222 = vadd.f32 %v538, %v1221
    %1223 = vmatprep.mubr.f32.mxu0 0.0
    %1224 = vmatmul.mubr.f32.gmra.mrb[0].mxu0 %v802
    %v1225 = vpop.f32.mrb[0].mxu0
    %v1226 = vadd.f32 %v542, %v1225
    %v1227 = vpop.f32.mrb[0].mxu0
    %v1228 = vadd.f32 %v544, %v1227
    %1229 = vdwg.mxu0
    %v1231 = vsel %vm344, %v566, 0
    %v1234 = vsel %vm344, %v567, 0
    %1236 = vmatprep.subr.mxu0 %v559
    %1237 = vmatpush1.msra.mxu0 %v558
    %1238 = vmatprep.subr.mxu0 %v561
    %1239 = vmatpush1.msra.mxu0 %v560
    %1240 = vmatprep.subr.mxu0 %v563
    %1241 = vmatpush1.msra.mxu0 %v562
    %1242 = vmatprep.subr.mxu0 %v565
    %1243 = vmatpush1.msra.mxu0 %v564
    %1244 = vmatprep.subr.mxu0 %v1234
    %1245 = vmatpush1.msra.mxu0 %v1231
    %1246 = vmatprep.subr.mxu0 0.0
    %1247 = vmatpush1.msra.mxu0 0.0
    %1248 = vmatprep.subr.mxu0 0.0
    %1249 = vmatpush1.msra.mxu0 0.0
    %1250 = vmatprep.subr.mxu0 0.0
    %1251 = vmatpush1.msra.mxu0 0.0
    %1252 = vmatprep.subr.mxu0 0.0
    %1253 = vmatpush1.msra.mxu0 0.0
    %1254 = vmatprep.subr.mxu0 0.0
    %1255 = vmatpush1.msra.mxu0 0.0
    %1256 = vmatprep.subr.mxu0 0.0
    %1257 = vmatpush1.msra.mxu0 0.0
    %1258 = vmatprep.subr.mxu0 0.0
    %1259 = vmatpush1.msra.mxu0 0.0
    %1260 = vmatprep.subr.mxu0 0.0
    %1261 = vmatpush1.msra.mxu0 0.0
    %1262 = vmatprep.subr.mxu0 0.0
    %1263 = vmatpush1.msra.mxu0 0.0
    %1264 = vmatprep.subr.mxu0 0.0
    %1265 = vmatpush1.msra.mxu0 0.0
    %1266 = vmatprep.subr.mxu0 0.0
    %1267 = vmatpush1.msra.mxu0 0.0
    %1268 = vmatprep.subr.mxu0 0.0
    %1269 = vmatpush1.msra.mxu0 0.0
    %1270 = vmatprep.subr.mxu0 0.0
    %1271 = vmatpush1.msra.mxu0 0.0
    %1272 = vmatprep.subr.mxu0 0.0
    %1273 = vmatpush1.msra.mxu0 0.0
    %1274 = vmatprep.subr.mxu0 0.0
    %1275 = vmatpush1.msra.mxu0 0.0
    %1276 = vmatprep.subr.mxu0 0.0
    %1277 = vmatpush1.msra.mxu0 0.0
    %1278 = vmatprep.subr.mxu0 0.0
    %1279 = vmatpush1.msra.mxu0 0.0
    %1280 = vmatprep.subr.mxu0 0.0
    %1281 = vmatpush1.msra.mxu0 0.0
    %1282 = vmatprep.subr.mxu0 0.0
    %1283 = vmatpush1.msra.mxu0 0.0
    %1284 = vmatprep.subr.mxu0 0.0
    %1285 = vmatpush1.msra.mxu0 0.0
    %1286 = vmatprep.subr.mxu0 0.0
    %1287 = vmatpush1.msra.mxu0 0.0
    %1288 = vmatprep.subr.mxu0 0.0
    %1289 = vmatpush1.msra.mxu0 0.0
    %1290 = vmatprep.subr.mxu0 0.0
    %1291 = vmatpush1.msra.mxu0 0.0
    %1292 = vmatprep.subr.mxu0 0.0
    %1293 = vmatpush1.msra.mxu0 0.0
    %1294 = vmatprep.subr.mxu0 0.0
    %1295 = vmatpush1.msra.mxu0 0.0
    %1296 = vmatprep.subr.mxu0 0.0
    %1297 = vmatpush1.msra.mxu0 0.0
    %1298 = vmatprep.subr.mxu0 0.0
    %1299 = vmatpush1.msra.mxu0 0.0
    %1300 = vmatprep.mubr.f32.mxu0 0.0
    %1301 = vmatmul.mubr.f32.gmra.mrb[0].mxu0 %v900
    %v1302 = vpop.f32.mrb[0].mxu0
    %v1303 = vadd.f32 %v770, %v1302
    %v1304 = vpop.f32.mrb[0].mxu0
    %v1305 = vadd.f32 %v772, %v1304
    %1306 = vmatprep.mubr.f32.mxu0 0.0
    %1307 = vmatmul.mubr.f32.gmra.mrb[0].mxu0 %v903
    %v1308 = vpop.f32.mrb[0].mxu0
    %v1309 = vadd.f32 %v776, %v1308
    %v1310 = vpop.f32.mrb[0].mxu0
    %v1311 = vadd.f32 %v778, %v1310
    %1312 = vmatprep.mubr.f32.mxu0 0.0
    %1313 = vmatmul.mubr.f32.gmra.mrb[0].mxu0 %v906
    %v1314 = vpop.f32.mrb[0].mxu0
    %v1315 = vadd.f32 %v782, %v1314
    %v1316 = vpop.f32.mrb[0].mxu0
    %v1317 = vadd.f32 %v784, %v1316
    %1318 = vmatprep.mubr.f32.mxu0 0.0
    %1319 = vmatmul.mubr.f32.gmra.mrb[0].mxu0 %v909
    %v1320 = vpop.f32.mrb[0].mxu0
    %v1321 = vadd.f32 %v788, %v1320
    %v1322 = vpop.f32.mrb[0].mxu0
    %v1323 = vadd.f32 %v790, %v1322
    %1324 = vdwg.mxu0
    %v1325 = vadd.f32 %v1208, %v1303
    %v1326 = vadd.f32 %v1210, %v1305
    %v1327 = vadd.f32 %v1214, %v1309
    %v1328 = vadd.f32 %v1216, %v1311
    %v1329 = vadd.f32 %v1220, %v1315
    %v1330 = vadd.f32 %v1222, %v1317
    %v1331 = vadd.f32 %v1226, %v1321
    %v1332 = vadd.f32 %v1228, %v1323
    %v1333 = vld [vmem:[%s8] sm:$0xff]
    %v1334 = vld [vmem:[%s8 + $0x8] sm:$0xff]
    %v1335 = vld [vmem:[%s8 + $0x10] sm:$0xff]
    %v1336 = vld [vmem:[%s8 + $0x18] sm:$0xff]
    %v1337 = vmul.f32 %v1325, %v50
    %v1338 = vmul.f32 %v1326, %v51
    %v1339 = vmul.f32 %v1327, %v52
    %v1340 = vmul.f32 %v1328, %v53
    %v1341 = vmul.f32 %v1329, %v54
    %v1342 = vmul.f32 %v1330, %v55
    %v1343 = vmul.f32 %v1331, %v56
    %v1344 = vmul.f32 %v1332, %v57
    %1345 = vmatprep.subr.mxu0 0.0
    %1346 = vmatpush1.msra.mxu0 %v58
    %1347 = vmatprep.subr.mxu0 0.0
    %1348 = vmatpush1.msra.mxu0 %v59
    %1349 = vmatprep.subr.mxu0 0.0
    %1350 = vmatpush1.msra.mxu0 %v60
    %1351 = vmatprep.subr.mxu0 0.0
    %1352 = vmatpush1.msra.mxu0 %v61
    %1353 = vmatprep.subr.mxu0 0.0
    %1354 = vmatpush1.msra.mxu0 %v62
    %1355 = vmatprep.subr.mxu0 0.0
    %1356 = vmatpush1.msra.mxu0 %v63
    %1357 = vmatprep.subr.mxu0 0.0
    %1358 = vmatpush1.msra.mxu0 %v64
    %1359 = vmatprep.subr.mxu0 0.0
    %1360 = vmatpush1.msra.mxu0 %v65
    %1361 = vmatprep.subr.mxu0 0.0
    %1362 = vmatpush1.msra.mxu0 %v66
    %1363 = vmatprep.subr.mxu0 0.0
    %1364 = vmatpush1.msra.mxu0 %v67
    %1365 = vmatprep.subr.mxu0 0.0
    %1366 = vmatpush1.msra.mxu0 %v68
    %1367 = vmatprep.subr.mxu0 0.0
    %1368 = vmatpush1.msra.mxu0 %v69
    %1369 = vmatprep.subr.mxu0 0.0
    %1370 = vmatpush1.msra.mxu0 %v70
    %1371 = vmatprep.subr.mxu0 0.0
    %1372 = vmatpush1.msra.mxu0 %v71
    %1373 = vmatprep.subr.mxu0 0.0
    %1374 = vmatpush1.msra.mxu0 %v72
    %1375 = vmatprep.subr.mxu0 0.0
    %1376 = vmatpush1.msra.mxu0 %v73
    %1377 = vmatprep.subr.mxu0 0.0
    %1378 = vmatpush1.msra.mxu0 %v74
    %1379 = vmatprep.subr.mxu0 0.0
    %1380 = vmatpush1.msra.mxu0 %v75
    %1381 = vmatprep.subr.mxu0 0.0
    %1382 = vmatpush1.msra.mxu0 %v76
    %1383 = vmatprep.subr.mxu0 0.0
    %1384 = vmatpush1.msra.mxu0 %v77
    %1385 = vmatprep.subr.mxu0 0.0
    %1386 = vmatpush1.msra.mxu0 %v78
    %1387 = vmatprep.subr.mxu0 0.0
    %1388 = vmatpush1.msra.mxu0 %v79
    %1389 = vmatprep.subr.mxu0 0.0
    %1390 = vmatpush1.msra.mxu0 %v80
    %1391 = vmatprep.subr.mxu0 0.0
    %1392 = vmatpush1.msra.mxu0 %v81
    %1393 = vmatprep.subr.mxu0 0.0
    %1394 = vmatpush1.msra.mxu0 %v82
    %1395 = vmatprep.subr.mxu0 0.0
    %1396 = vmatpush1.msra.mxu0 %v83
    %1397 = vmatprep.subr.mxu0 0.0
    %1398 = vmatpush1.msra.mxu0 %v84
    %1399 = vmatprep.subr.mxu0 0.0
    %1400 = vmatpush1.msra.mxu0 %v85
    %1401 = vmatprep.subr.mxu0 0.0
    %1402 = vmatpush1.msra.mxu0 %v86
    %1403 = vmatprep.subr.mxu0 0.0
    %1404 = vmatpush1.msra.mxu0 %v87
    %1405 = vmatprep.subr.mxu0 0.0
    %1406 = vmatpush1.msra.mxu0 %v88
    %1407 = vmatprep.subr.mxu0 0.0
    %1408 = vmatpush1.msra.mxu0 %v89
    %1409 = vmatprep.mubr.f32.mxu0 %v1338
    %1410 = vmatmul.mubr.f32.gmra.mrb[0].mxu0 %v1337
    %v1411 = vpop.f32.mrb[0].mxu0
    %v1412 = vadd.f32 %v1333, %v1411
    %v1413 = vpop.f32.mrb[0].mxu0
    %1414 = vmatprep.mubr.f32.mxu0 %v1340
    %1415 = vmatmul.mubr.f32.gmra.mrb[0].mxu0 %v1339
    %v1416 = vpop.f32.mrb[0].mxu0
    %v1417 = vadd.f32 %v1334, %v1416
    %v1418 = vpop.f32.mrb[0].mxu0
    %1419 = vmatprep.mubr.f32.mxu0 %v1342
    %1420 = vmatmul.mubr.f32.gmra.mrb[0].mxu0 %v1341
    %v1421 = vpop.f32.mrb[0].mxu0
    %v1422 = vadd.f32 %v1335, %v1421
    %v1423 = vpop.f32.mrb[0].mxu0
    %1424 = vmatprep.mubr.f32.mxu0 %v1344
    %1425 = vmatmul.mubr.f32.gmra.mrb[0].mxu0 %v1343
    %v1426 = vpop.f32.mrb[0].mxu0
    %v1427 = vadd.f32 %v1336, %v1426
    %v1428 = vpop.f32.mrb[0].mxu0
    %1429 = vdwg.mxu0
    %v1430 = vxor.u32 %v1412, 2147483648
    %v1431 = vxor.u32 %v1417, 2147483648
    %v1432 = vxor.u32 %v1422, 2147483648
    %v1433 = vxor.u32 %v1427, 2147483648
    %v1434 = vmul.f32 %v1430, 1.442695
    %v1435 = vpow.pop %v1434
    %v1436 = vmul.f32 %v1431, 1.442695
    %v1437 = vpow.pop %v1436
    %v1438 = vmul.f32 %v1432, 1.442695
    %v1439 = vpow.pop %v1438
    %v1440 = vmul.f32 %v1433, 1.442695
    %v1441 = vpow.pop %v1440
    %v1442 = vadd.f32 %v1435, 1.0
    %v1443 = vadd.f32 %v1437, 1.0
    %v1444 = vadd.f32 %v1439, 1.0
    %v1445 = vadd.f32 %v1441, 1.0
    %v1446 = vrcp.pop %v1442
    %v1447 = vmul.f32 1.0, %v1446
    %v1448 = vrcp.pop %v1443
    %v1449 = vmul.f32 1.0, %v1448
    %v1450 = vrcp.pop %v1444
    %v1451 = vmul.f32 1.0, %v1450
    %v1452 = vrcp.pop %v1445
    %v1453 = vmul.f32 1.0, %v1452
    %v1454 = vmul.f32 %v1128, %v46
    %v1455 = vmul.f32 %v1130, %v47
    %v1456 = vmul.f32 %v1132, %v48
    %v1457 = vmul.f32 %v1134, %v49
    %1458 = vmatprep.subr.mxu0 0.0
    %1459 = vmatpush1.msra.mxu0 %v1454
    %1460 = vmatprep.subr.mxu0 0.0
    %1461 = vmatpush1.msra.mxu0 %v1455
    %1462 = vmatprep.subr.mxu0 0.0
    %1463 = vmatpush1.msra.mxu0 %v1456
    %1464 = vmatprep.subr.mxu0 0.0
    %1465 = vmatpush1.msra.mxu0 %v1457
    %1466 = vmatprep.subr.mxu0 0.0
    %1467 = vmatpush1.msra.mxu0 0.0
    %1468 = vmatprep.subr.mxu0 0.0
    %1469 = vmatpush1.msra.mxu0 0.0
    %1470 = vmatprep.subr.mxu0 0.0
    %1471 = vmatpush1.msra.mxu0 0.0
    %1472 = vmatprep.subr.mxu0 0.0
    %1473 = vmatpush1.msra.mxu0 0.0
    %1474 = vmatprep.subr.mxu0 0.0
    %1475 = vmatpush1.msra.mxu0 0.0
    %1476 = vmatprep.subr.mxu0 0.0
    %1477 = vmatpush1.msra.mxu0 0.0
    %1478 = vmatprep.subr.mxu0 0.0
    %1479 = vmatpush1.msra.mxu0 0.0
    %1480 = vmatprep.subr.mxu0 0.0
    %1481 = vmatpush1.msra.mxu0 0.0
    %1482 = vmatprep.subr.mxu0 0.0
    %1483 = vmatpush1.msra.mxu0 0.0
    %1484 = vmatprep.subr.mxu0 0.0
    %1485 = vmatpush1.msra.mxu0 0.0
    %1486 = vmatprep.subr.mxu0 0.0
    %1487 = vmatpush1.msra.mxu0 0.0
    %1488 = vmatprep.subr.mxu0 0.0
    %1489 = vmatpush1.msra.mxu0 0.0
    %1490 = vmatprep.subr.mxu0 0.0
    %1491 = vmatpush1.msra.mxu0 0.0
    %1492 = vmatprep.subr.mxu0 0.0
    %1493 = vmatpush1.msra.mxu0 0.0
    %1494 = vmatprep.subr.mxu0 0.0
    %1495 = vmatpush1.msra.mxu0 0.0
    %1496 = vmatprep.subr.mxu0 0.0
    %1497 = vmatpush1.msra.mxu0 0.0
    %1498 = vmatprep.subr.mxu0 0.0
    %1499 = vmatpush1.msra.mxu0 0.0
    %1500 = vmatprep.subr.mxu0 0.0
    %1501 = vmatpush1.msra.mxu0 0.0
    %1502 = vmatprep.subr.mxu0 0.0
    %1503 = vmatpush1.msra.mxu0 0.0
    %1504 = vmatprep.subr.mxu0 0.0
    %1505 = vmatpush1.msra.mxu0 0.0
    %1506 = vmatprep.subr.mxu0 0.0
    %1507 = vmatpush1.msra.mxu0 0.0
    %1508 = vmatprep.subr.mxu0 0.0
    %1509 = vmatpush1.msra.mxu0 0.0
    %1510 = vmatprep.subr.mxu0 0.0
    %1511 = vmatpush1.msra.mxu0 0.0
    %1512 = vmatprep.subr.mxu0 0.0
    %1513 = vmatpush1.msra.mxu0 0.0
    %1514 = vmatprep.subr.mxu0 0.0
    %1515 = vmatpush1.msra.mxu0 0.0
    %1516 = vmatprep.subr.mxu0 0.0
    %1517 = vmatpush1.msra.mxu0 0.0
    %1518 = vmatprep.subr.mxu0 0.0
    %1519 = vmatpush1.msra.mxu0 0.0
    %1520 = vmatprep.subr.mxu0 0.0
    %1521 = vmatpush1.msra.mxu0 0.0
    %1522 = vmatprep.mubr.f32.mxu0 0.0
    %1523 = vmatmul.mubr.f32.gmra.mrb[0].mxu0 %v108
    %v1524 = vpop.f32.mrb[0].mxu0
    %v1525 = vadd.f32 0.0, %v1524
    %v1526 = vpop.f32.mrb[0].mxu0
    %1527 = vmatprep.mubr.f32.mxu0 0.0
    %1528 = vmatmul.mubr.f32.gmra.mrb[0].mxu0 %v111
    %v1529 = vpop.f32.mrb[0].mxu0
    %v1530 = vadd.f32 0.0, %v1529
    %v1531 = vpop.f32.mrb[0].mxu0
    %1532 = vmatprep.mubr.f32.mxu0 0.0
    %1533 = vmatmul.mubr.f32.gmra.mrb[0].mxu0 %v114
    %v1534 = vpop.f32.mrb[0].mxu0
    %v1535 = vadd.f32 0.0, %v1534
    %v1536 = vpop.f32.mrb[0].mxu0
    %1537 = vmatprep.mubr.f32.mxu0 0.0
    %1538 = vmatmul.mubr.f32.gmra.mrb[0].mxu0 %v117
    %v1539 = vpop.f32.mrb[0].mxu0
    %v1540 = vadd.f32 0.0, %v1539
    %v1541 = vpop.f32.mrb[0].mxu0
    %1542 = vmatprep.mubr.f32.mxu0 0.0
    %1543 = vmatmul.mubr.f32.gmra.mrb[0].mxu0 %v120
    %v1544 = vpop.f32.mrb[0].mxu0
    %v1545 = vadd.f32 0.0, %v1544
    %v1546 = vpop.f32.mrb[0].mxu0
    %1547 = vmatprep.mubr.f32.mxu0 0.0
    %1548 = vmatmul.mubr.f32.gmra.mrb[0].mxu0 %v123
    %v1549 = vpop.f32.mrb[0].mxu0
    %v1550 = vadd.f32 0.0, %v1549
    %v1551 = vpop.f32.mrb[0].mxu0
    %1552 = vmatprep.mubr.f32.mxu0 0.0
    %1553 = vmatmul.mubr.f32.gmra.mrb[0].mxu0 %v126
    %v1554 = vpop.f32.mrb[0].mxu0
    %v1555 = vadd.f32 0.0, %v1554
    %v1556 = vpop.f32.mrb[0].mxu0
    %1557 = vmatprep.mubr.f32.mxu0 0.0
    %1558 = vmatmul.mubr.f32.gmra.mrb[0].mxu0 %v129
    %v1559 = vpop.f32.mrb[0].mxu0
    %v1560 = vadd.f32 0.0, %v1559
    %v1561 = vpop.f32.mrb[0].mxu0
    %1562 = vmatprep.mubr.f32.mxu0 0.0
    %1563 = vmatmul.mubr.f32.gmra.mrb[0].mxu0 %v132
    %v1564 = vpop.f32.mrb[0].mxu0
    %v1565 = vadd.f32 0.0, %v1564
    %v1566 = vpop.f32.mrb[0].mxu0
    %1567 = vmatprep.mubr.f32.mxu0 0.0
    %1568 = vmatmul.mubr.f32.gmra.mrb[0].mxu0 %v135
    %v1569 = vpop.f32.mrb[0].mxu0
    %v1570 = vadd.f32 0.0, %v1569
    %v1571 = vpop.f32.mrb[0].mxu0
    %1572 = vmatprep.mubr.f32.mxu0 0.0
    %1573 = vmatmul.mubr.f32.gmra.mrb[0].mxu0 %v138
    %v1574 = vpop.f32.mrb[0].mxu0
    %v1575 = vadd.f32 0.0, %v1574
    %v1576 = vpop.f32.mrb[0].mxu0
    %1577 = vmatprep.mubr.f32.mxu0 0.0
    %1578 = vmatmul.mubr.f32.gmra.mrb[0].mxu0 %v141
    %v1579 = vpop.f32.mrb[0].mxu0
    %v1580 = vadd.f32 0.0, %v1579
    %v1581 = vpop.f32.mrb[0].mxu0
    %1582 = vmatprep.mubr.f32.mxu0 0.0
    %1583 = vmatmul.mubr.f32.gmra.mrb[0].mxu0 %v144
    %v1584 = vpop.f32.mrb[0].mxu0
    %v1585 = vadd.f32 0.0, %v1584
    %v1586 = vpop.f32.mrb[0].mxu0
    %1587 = vmatprep.mubr.f32.mxu0 0.0
    %1588 = vmatmul.mubr.f32.gmra.mrb[0].mxu0 %v147
    %v1589 = vpop.f32.mrb[0].mxu0
    %v1590 = vadd.f32 0.0, %v1589
    %v1591 = vpop.f32.mrb[0].mxu0
    %1592 = vmatprep.mubr.f32.mxu0 0.0
    %1593 = vmatmul.mubr.f32.gmra.mrb[0].mxu0 %v150
    %v1594 = vpop.f32.mrb[0].mxu0
    %v1595 = vadd.f32 0.0, %v1594
    %v1596 = vpop.f32.mrb[0].mxu0
    %1597 = vmatprep.mubr.f32.mxu0 0.0
    %1598 = vmatmul.mubr.f32.gmra.mrb[0].mxu0 %v153
    %v1599 = vpop.f32.mrb[0].mxu0
    %v1600 = vadd.f32 0.0, %v1599
    %v1601 = vpop.f32.mrb[0].mxu0
    %1602 = vdwg.mxu0
    %v1603 = vld [vmem:[%s5] sm:$0xff]
    %v1604 = vld [vmem:[%s6] sm:$0xff]
    %v1605 = vld [vmem:[%s6 + $0x8] sm:$0xff]
    %v1606 = vld [vmem:[%s6 + $0x10] sm:$0xff]
    %v1607 = vld [vmem:[%s6 + $0x18] sm:$0xff]
    %v1608 = vld [vmem:[%s6 + $0x20] sm:$0xff]
    %v1609 = vld [vmem:[%s6 + $0x28] sm:$0xff]
    %v1610 = vld [vmem:[%s6 + $0x30] sm:$0xff]
    %v1611 = vld [vmem:[%s6 + $0x38] sm:$0xff]
    %v1613 = vsel %vm106, %v1525, 0
    %v1616 = vsel %vm106, %v1530, 0
    %v1619 = vsel %vm106, %v1535, 0
    %v1622 = vsel %vm106, %v1540, 0
    %1624 = vmatprep.subr.mxu0 %v1605
    %1625 = vmatpush1.msra.mxu0 %v1604
    %1626 = vmatprep.subr.mxu0 %v1607
    %1627 = vmatpush1.msra.mxu0 %v1606
    %1628 = vmatprep.subr.mxu0 %v1609
    %1629 = vmatpush1.msra.mxu0 %v1608
    %1630 = vmatprep.subr.mxu0 %v1611
    %1631 = vmatpush1.msra.mxu0 %v1610
    %1632 = vmatprep.subr.mxu0 0.0
    %1633 = vmatpush1.msra.mxu0 0.0
    %1634 = vmatprep.subr.mxu0 0.0
    %1635 = vmatpush1.msra.mxu0 0.0
    %1636 = vmatprep.subr.mxu0 0.0
    %1637 = vmatpush1.msra.mxu0 0.0
    %1638 = vmatprep.subr.mxu0 0.0
    %1639 = vmatpush1.msra.mxu0 0.0
    %1640 = vmatprep.subr.mxu0 0.0
    %1641 = vmatpush1.msra.mxu0 0.0
    %1642 = vmatprep.subr.mxu0 0.0
    %1643 = vmatpush1.msra.mxu0 0.0
    %1644 = vmatprep.subr.mxu0 0.0
    %1645 = vmatpush1.msra.mxu0 0.0
    %1646 = vmatprep.subr.mxu0 0.0
    %1647 = vmatpush1.msra.mxu0 0.0
    %1648 = vmatprep.subr.mxu0 0.0
    %1649 = vmatpush1.msra.mxu0 0.0
    %1650 = vmatprep.subr.mxu0 0.0
    %1651 = vmatpush1.msra.mxu0 0.0
    %1652 = vmatprep.subr.mxu0 0.0
    %1653 = vmatpush1.msra.mxu0 0.0
    %1654 = vmatprep.subr.mxu0 0.0
    %1655 = vmatpush1.msra.mxu0 0.0
    %1656 = vmatprep.subr.mxu0 0.0
    %1657 = vmatpush1.msra.mxu0 0.0
    %1658 = vmatprep.subr.mxu0 0.0
    %1659 = vmatpush1.msra.mxu0 0.0
    %1660 = vmatprep.subr.mxu0 0.0
    %1661 = vmatpush1.msra.mxu0 0.0
    %1662 = vmatprep.subr.mxu0 0.0
    %1663 = vmatpush1.msra.mxu0 0.0
    %1664 = vmatprep.subr.mxu0 0.0
    %1665 = vmatpush1.msra.mxu0 0.0
    %1666 = vmatprep.subr.mxu0 0.0
    %1667 = vmatpush1.msra.mxu0 0.0
    %1668 = vmatprep.subr.mxu0 0.0
    %1669 = vmatpush1.msra.mxu0 0.0
    %1670 = vmatprep.subr.mxu0 0.0
    %1671 = vmatpush1.msra.mxu0 0.0
    %1672 = vmatprep.subr.mxu0 0.0
    %1673 = vmatpush1.msra.mxu0 0.0
    %1674 = vmatprep.subr.mxu0 0.0
    %1675 = vmatpush1.msra.mxu0 0.0
    %1676 = vmatprep.subr.mxu0 0.0
    %1677 = vmatpush1.msra.mxu0 0.0
    %1678 = vmatprep.subr.mxu0 0.0
    %1679 = vmatpush1.msra.mxu0 0.0
    %1680 = vmatprep.subr.mxu0 0.0
    %1681 = vmatpush1.msra.mxu0 0.0
    %1682 = vmatprep.subr.mxu0 0.0
    %1683 = vmatpush1.msra.mxu0 0.0
    %1684 = vmatprep.subr.mxu0 0.0
    %1685 = vmatpush1.msra.mxu0 0.0
    %1686 = vmatprep.subr.mxu0 0.0
    %1687 = vmatpush1.msra.mxu0 0.0
    %1688 = vmatprep.mubr.f32.mxu0 0.0
    %1689 = vmatmul.mubr.f32.gmra.mrb[0].mxu0 %v1613
    %v1690 = vpop.f32.mrb[0].mxu0
    %v1691 = vadd.f32 0.0, %v1690
    %v1692 = vpop.f32.mrb[0].mxu0
    %v1693 = vadd.f32 0.0, %v1692
    %1694 = vmatprep.mubr.f32.mxu0 0.0
    %1695 = vmatmul.mubr.f32.gmra.mrb[0].mxu0 %v1616
    %v1696 = vpop.f32.mrb[0].mxu0
    %v1697 = vadd.f32 0.0, %v1696
    %v1698 = vpop.f32.mrb[0].mxu0
    %v1699 = vadd.f32 0.0, %v1698
    %1700 = vmatprep.mubr.f32.mxu0 0.0
    %1701 = vmatmul.mubr.f32.gmra.mrb[0].mxu0 %v1619
    %v1702 = vpop.f32.mrb[0].mxu0
    %v1703 = vadd.f32 0.0, %v1702
    %v1704 = vpop.f32.mrb[0].mxu0
    %v1705 = vadd.f32 0.0, %v1704
    %1706 = vmatprep.mubr.f32.mxu0 0.0
    %1707 = vmatmul.mubr.f32.gmra.mrb[0].mxu0 %v1622
    %v1708 = vpop.f32.mrb[0].mxu0
    %v1709 = vadd.f32 0.0, %v1708
    %v1710 = vpop.f32.mrb[0].mxu0
    %v1711 = vadd.f32 0.0, %v1710
    %1712 = vdwg.mxu0
    %s1713 = scalar_lea.vmem %s5, 8
    %v1714 = vld [vmem:[%s1713] sm:$0xff]
    %s1715 = scalar_lea.vmem %s6, 64
    %v1716 = vld [vmem:[%s1715] sm:$0xff]
    %v1717 = vld [vmem:[%s1715 + $0x8] sm:$0xff]
    %v1718 = vld [vmem:[%s1715 + $0x10] sm:$0xff]
    %v1719 = vld [vmem:[%s1715 + $0x18] sm:$0xff]
    %v1720 = vld [vmem:[%s1715 + $0x20] sm:$0xff]
    %v1721 = vld [vmem:[%s1715 + $0x28] sm:$0xff]
    %v1722 = vld [vmem:[%s1715 + $0x30] sm:$0xff]
    %v1723 = vld [vmem:[%s1715 + $0x38] sm:$0xff]
    %v1725 = vsel %vm106, %v1545, 0
    %v1728 = vsel %vm106, %v1550, 0
    %v1731 = vsel %vm106, %v1555, 0
    %v1734 = vsel %vm106, %v1560, 0
    %1736 = vmatprep.subr.mxu0 %v1717
    %1737 = vmatpush1.msra.mxu0 %v1716
    %1738 = vmatprep.subr.mxu0 %v1719
    %1739 = vmatpush1.msra.mxu0 %v1718
    %1740 = vmatprep.subr.mxu0 %v1721
    %1741 = vmatpush1.msra.mxu0 %v1720
    %1742 = vmatprep.subr.mxu0 %v1723
    %1743 = vmatpush1.msra.mxu0 %v1722
    %1744 = vmatprep.subr.mxu0 0.0
    %1745 = vmatpush1.msra.mxu0 0.0
    %1746 = vmatprep.subr.mxu0 0.0
    %1747 = vmatpush1.msra.mxu0 0.0
    %1748 = vmatprep.subr.mxu0 0.0
    %1749 = vmatpush1.msra.mxu0 0.0
    %1750 = vmatprep.subr.mxu0 0.0
    %1751 = vmatpush1.msra.mxu0 0.0
    %1752 = vmatprep.subr.mxu0 0.0
    %1753 = vmatpush1.msra.mxu0 0.0
    %1754 = vmatprep.subr.mxu0 0.0
    %1755 = vmatpush1.msra.mxu0 0.0
    %1756 = vmatprep.subr.mxu0 0.0
    %1757 = vmatpush1.msra.mxu0 0.0
    %1758 = vmatprep.subr.mxu0 0.0
    %1759 = vmatpush1.msra.mxu0 0.0
    %1760 = vmatprep.subr.mxu0 0.0
    %1761 = vmatpush1.msra.mxu0 0.0
    %1762 = vmatprep.subr.mxu0 0.0
    %1763 = vmatpush1.msra.mxu0 0.0
    %1764 = vmatprep.subr.mxu0 0.0
    %1765 = vmatpush1.msra.mxu0 0.0
    %1766 = vmatprep.subr.mxu0 0.0
    %1767 = vmatpush1.msra.mxu0 0.0
    %1768 = vmatprep.subr.mxu0 0.0
    %1769 = vmatpush1.msra.mxu0 0.0
    %1770 = vmatprep.subr.mxu0 0.0
    %1771 = vmatpush1.msra.mxu0 0.0
    %1772 = vmatprep.subr.mxu0 0.0
    %1773 = vmatpush1.msra.mxu0 0.0
    %1774 = vmatprep.subr.mxu0 0.0
    %1775 = vmatpush1.msra.mxu0 0.0
    %1776 = vmatprep.subr.mxu0 0.0
    %1777 = vmatpush1.msra.mxu0 0.0
    %1778 = vmatprep.subr.mxu0 0.0
    %1779 = vmatpush1.msra.mxu0 0.0
    %1780 = vmatprep.subr.mxu0 0.0
    %1781 = vmatpush1.msra.mxu0 0.0
    %1782 = vmatprep.subr.mxu0 0.0
    %1783 = vmatpush1.msra.mxu0 0.0
    %1784 = vmatprep.subr.mxu0 0.0
    %1785 = vmatpush1.msra.mxu0 0.0
    %1786 = vmatprep.subr.mxu0 0.0
    %1787 = vmatpush1.msra.mxu0 0.0
    %1788 = vmatprep.subr.mxu0 0.0
    %1789 = vmatpush1.msra.mxu0 0.0
    %1790 = vmatprep.subr.mxu0 0.0
    %1791 = vmatpush1.msra.mxu0 0.0
    %1792 = vmatprep.subr.mxu0 0.0
    %1793 = vmatpush1.msra.mxu0 0.0
    %1794 = vmatprep.subr.mxu0 0.0
    %1795 = vmatpush1.msra.mxu0 0.0
    %1796 = vmatprep.subr.mxu0 0.0
    %1797 = vmatpush1.msra.mxu0 0.0
    %1798 = vmatprep.subr.mxu0 0.0
    %1799 = vmatpush1.msra.mxu0 0.0
    %1800 = vmatprep.mubr.f32.mxu0 0.0
    %1801 = vmatmul.mubr.f32.gmra.mrb[0].mxu0 %v1725
    %v1802 = vpop.f32.mrb[0].mxu0
    %v1803 = vadd.f32 0.0, %v1802
    %v1804 = vpop.f32.mrb[0].mxu0
    %v1805 = vadd.f32 0.0, %v1804
    %1806 = vmatprep.mubr.f32.mxu0 0.0
    %1807 = vmatmul.mubr.f32.gmra.mrb[0].mxu0 %v1728
    %v1808 = vpop.f32.mrb[0].mxu0
    %v1809 = vadd.f32 0.0, %v1808
    %v1810 = vpop.f32.mrb[0].mxu0
    %v1811 = vadd.f32 0.0, %v1810
    %1812 = vmatprep.mubr.f32.mxu0 0.0
    %1813 = vmatmul.mubr.f32.gmra.mrb[0].mxu0 %v1731
    %v1814 = vpop.f32.mrb[0].mxu0
    %v1815 = vadd.f32 0.0, %v1814
    %v1816 = vpop.f32.mrb[0].mxu0
    %v1817 = vadd.f32 0.0, %v1816
    %1818 = vmatprep.mubr.f32.mxu0 0.0
    %1819 = vmatmul.mubr.f32.gmra.mrb[0].mxu0 %v1734
    %v1820 = vpop.f32.mrb[0].mxu0
    %v1821 = vadd.f32 0.0, %v1820
    %v1822 = vpop.f32.mrb[0].mxu0
    %v1823 = vadd.f32 0.0, %v1822
    %1824 = vdwg.mxu0
    %s1825 = scalar_lea.vmem %s5, 16
    %v1826 = vld [vmem:[%s1825] sm:$0xff]
    %s1827 = scalar_lea.vmem %s6, 128
    %v1828 = vld [vmem:[%s1827] sm:$0xff]
    %v1829 = vld [vmem:[%s1827 + $0x8] sm:$0xff]
    %v1830 = vld [vmem:[%s1827 + $0x10] sm:$0xff]
    %v1831 = vld [vmem:[%s1827 + $0x18] sm:$0xff]
    %v1832 = vld [vmem:[%s1827 + $0x20] sm:$0xff]
    %v1833 = vld [vmem:[%s1827 + $0x28] sm:$0xff]
    %v1834 = vld [vmem:[%s1827 + $0x30] sm:$0xff]
    %v1835 = vld [vmem:[%s1827 + $0x38] sm:$0xff]
    %v1837 = vsel %vm106, %v1565, 0
    %v1840 = vsel %vm106, %v1570, 0
    %v1843 = vsel %vm106, %v1575, 0
    %v1846 = vsel %vm106, %v1580, 0
    %1848 = vmatprep.subr.mxu0 %v1829
    %1849 = vmatpush1.msra.mxu0 %v1828
    %1850 = vmatprep.subr.mxu0 %v1831
    %1851 = vmatpush1.msra.mxu0 %v1830
    %1852 = vmatprep.subr.mxu0 %v1833
    %1853 = vmatpush1.msra.mxu0 %v1832
    %1854 = vmatprep.subr.mxu0 %v1835
    %1855 = vmatpush1.msra.mxu0 %v1834
    %1856 = vmatprep.subr.mxu0 0.0
    %1857 = vmatpush1.msra.mxu0 0.0
    %1858 = vmatprep.subr.mxu0 0.0
    %1859 = vmatpush1.msra.mxu0 0.0
    %1860 = vmatprep.subr.mxu0 0.0
    %1861 = vmatpush1.msra.mxu0 0.0
    %1862 = vmatprep.subr.mxu0 0.0
    %1863 = vmatpush1.msra.mxu0 0.0
    %1864 = vmatprep.subr.mxu0 0.0
    %1865 = vmatpush1.msra.mxu0 0.0
    %1866 = vmatprep.subr.mxu0 0.0
    %1867 = vmatpush1.msra.mxu0 0.0
    %1868 = vmatprep.subr.mxu0 0.0
    %1869 = vmatpush1.msra.mxu0 0.0
    %1870 = vmatprep.subr.mxu0 0.0
    %1871 = vmatpush1.msra.mxu0 0.0
    %1872 = vmatprep.subr.mxu0 0.0
    %1873 = vmatpush1.msra.mxu0 0.0
    %1874 = vmatprep.subr.mxu0 0.0
    %1875 = vmatpush1.msra.mxu0 0.0
    %1876 = vmatprep.subr.mxu0 0.0
    %1877 = vmatpush1.msra.mxu0 0.0
    %1878 = vmatprep.subr.mxu0 0.0
    %1879 = vmatpush1.msra.mxu0 0.0
    %1880 = vmatprep.subr.mxu0 0.0
    %1881 = vmatpush1.msra.mxu0 0.0
    %1882 = vmatprep.subr.mxu0 0.0
    %1883 = vmatpush1.msra.mxu0 0.0
    %1884 = vmatprep.subr.mxu0 0.0
    %1885 = vmatpush1.msra.mxu0 0.0
    %1886 = vmatprep.subr.mxu0 0.0
    %1887 = vmatpush1.msra.mxu0 0.0
    %1888 = vmatprep.subr.mxu0 0.0
    %1889 = vmatpush1.msra.mxu0 0.0
    %1890 = vmatprep.subr.mxu0 0.0
    %1891 = vmatpush1.msra.mxu0 0.0
    %1892 = vmatprep.subr.mxu0 0.0
    %1893 = vmatpush1.msra.mxu0 0.0
    %1894 = vmatprep.subr.mxu0 0.0
    %1895 = vmatpush1.msra.mxu0 0.0
    %1896 = vmatprep.subr.mxu0 0.0
    %1897 = vmatpush1.msra.mxu0 0.0
    %1898 = vmatprep.subr.mxu0 0.0
    %1899 = vmatpush1.msra.mxu0 0.0
    %1900 = vmatprep.subr.mxu0 0.0
    %1901 = vmatpush1.msra.mxu0 0.0
    %1902 = vmatprep.subr.mxu0 0.0
    %1903 = vmatpush1.msra.mxu0 0.0
    %1904 = vmatprep.subr.mxu0 0.0
    %1905 = vmatpush1.msra.mxu0 0.0
    %1906 = vmatprep.subr.mxu0 0.0
    %1907 = vmatpush1.msra.mxu0 0.0
    %1908 = vmatprep.subr.mxu0 0.0
    %1909 = vmatpush1.msra.mxu0 0.0
    %1910 = vmatprep.subr.mxu0 0.0
    %1911 = vmatpush1.msra.mxu0 0.0
    %1912 = vmatprep.mubr.f32.mxu0 0.0
    %1913 = vmatmul.mubr.f32.gmra.mrb[0].mxu0 %v1837
    %v1914 = vpop.f32.mrb[0].mxu0
    %v1915 = vadd.f32 0.0, %v1914
    %v1916 = vpop.f32.mrb[0].mxu0
    %v1917 = vadd.f32 0.0, %v1916
    %1918 = vmatprep.mubr.f32.mxu0 0.0
    %1919 = vmatmul.mubr.f32.gmra.mrb[0].mxu0 %v1840
    %v1920 = vpop.f32.mrb[0].mxu0
    %v1921 = vadd.f32 0.0, %v1920
    %v1922 = vpop.f32.mrb[0].mxu0
    %v1923 = vadd.f32 0.0, %v1922
    %1924 = vmatprep.mubr.f32.mxu0 0.0
    %1925 = vmatmul.mubr.f32.gmra.mrb[0].mxu0 %v1843
    %v1926 = vpop.f32.mrb[0].mxu0
    %v1927 = vadd.f32 0.0, %v1926
    %v1928 = vpop.f32.mrb[0].mxu0
    %v1929 = vadd.f32 0.0, %v1928
    %1930 = vmatprep.mubr.f32.mxu0 0.0
    %1931 = vmatmul.mubr.f32.gmra.mrb[0].mxu0 %v1846
    %v1932 = vpop.f32.mrb[0].mxu0
    %v1933 = vadd.f32 0.0, %v1932
    %v1934 = vpop.f32.mrb[0].mxu0
    %v1935 = vadd.f32 0.0, %v1934
    %1936 = vdwg.mxu0
    %s1937 = scalar_lea.vmem %s5, 24
    %v1938 = vld [vmem:[%s1937] sm:$0xff]
    %s1939 = scalar_lea.vmem %s6, 192
    %v1940 = vld [vmem:[%s1939] sm:$0xff]
    %v1941 = vld [vmem:[%s1939 + $0x8] sm:$0xff]
    %v1942 = vld [vmem:[%s1939 + $0x10] sm:$0xff]
    %v1943 = vld [vmem:[%s1939 + $0x18] sm:$0xff]
    %v1944 = vld [vmem:[%s1939 + $0x20] sm:$0xff]
    %v1945 = vld [vmem:[%s1939 + $0x28] sm:$0xff]
    %v1946 = vld [vmem:[%s1939 + $0x30] sm:$0xff]
    %v1947 = vld [vmem:[%s1939 + $0x38] sm:$0xff]
    %v1949 = vsel %vm106, %v1585, 0
    %v1952 = vsel %vm106, %v1590, 0
    %v1955 = vsel %vm106, %v1595, 0
    %v1958 = vsel %vm106, %v1600, 0
    %1960 = vmatprep.subr.mxu0 %v1941
    %1961 = vmatpush1.msra.mxu0 %v1940
    %1962 = vmatprep.subr.mxu0 %v1943
    %1963 = vmatpush1.msra.mxu0 %v1942
    %1964 = vmatprep.subr.mxu0 %v1945
    %1965 = vmatpush1.msra.mxu0 %v1944
    %1966 = vmatprep.subr.mxu0 %v1947
    %1967 = vmatpush1.msra.mxu0 %v1946
    %1968 = vmatprep.subr.mxu0 0.0
    %1969 = vmatpush1.msra.mxu0 0.0
    %1970 = vmatprep.subr.mxu0 0.0
    %1971 = vmatpush1.msra.mxu0 0.0
    %1972 = vmatprep.subr.mxu0 0.0
    %1973 = vmatpush1.msra.mxu0 0.0
    %1974 = vmatprep.subr.mxu0 0.0
    %1975 = vmatpush1.msra.mxu0 0.0
    %1976 = vmatprep.subr.mxu0 0.0
    %1977 = vmatpush1.msra.mxu0 0.0
    %1978 = vmatprep.subr.mxu0 0.0
    %1979 = vmatpush1.msra.mxu0 0.0
    %1980 = vmatprep.subr.mxu0 0.0
    %1981 = vmatpush1.msra.mxu0 0.0
    %1982 = vmatprep.subr.mxu0 0.0
    %1983 = vmatpush1.msra.mxu0 0.0
    %1984 = vmatprep.subr.mxu0 0.0
    %1985 = vmatpush1.msra.mxu0 0.0
    %1986 = vmatprep.subr.mxu0 0.0
    %1987 = vmatpush1.msra.mxu0 0.0
    %1988 = vmatprep.subr.mxu0 0.0
    %1989 = vmatpush1.msra.mxu0 0.0
    %1990 = vmatprep.subr.mxu0 0.0
    %1991 = vmatpush1.msra.mxu0 0.0
    %1992 = vmatprep.subr.mxu0 0.0
    %1993 = vmatpush1.msra.mxu0 0.0
    %1994 = vmatprep.subr.mxu0 0.0
    %1995 = vmatpush1.msra.mxu0 0.0
    %1996 = vmatprep.subr.mxu0 0.0
    %1997 = vmatpush1.msra.mxu0 0.0
    %1998 = vmatprep.subr.mxu0 0.0
    %1999 = vmatpush1.msra.mxu0 0.0
    %2000 = vmatprep.subr.mxu0 0.0
    %2001 = vmatpush1.msra.mxu0 0.0
    %2002 = vmatprep.subr.mxu0 0.0
    %2003 = vmatpush1.msra.mxu0 0.0
    %2004 = vmatprep.subr.mxu0 0.0
    %2005 = vmatpush1.msra.mxu0 0.0
    %2006 = vmatprep.subr.mxu0 0.0
    %2007 = vmatpush1.msra.mxu0 0.0
    %2008 = vmatprep.subr.mxu0 0.0
    %2009 = vmatpush1.msra.mxu0 0.0
    %2010 = vmatprep.subr.mxu0 0.0
    %2011 = vmatpush1.msra.mxu0 0.0
    %2012 = vmatprep.subr.mxu0 0.0
    %2013 = vmatpush1.msra.mxu0 0.0
    %2014 = vmatprep.subr.mxu0 0.0
    %2015 = vmatpush1.msra.mxu0 0.0
    %2016 = vmatprep.subr.mxu0 0.0
    %2017 = vmatpush1.msra.mxu0 0.0
    %2018 = vmatprep.subr.mxu0 0.0
    %2019 = vmatpush1.msra.mxu0 0.0
    %2020 = vmatprep.subr.mxu0 0.0
    %2021 = vmatpush1.msra.mxu0 0.0
    %2022 = vmatprep.subr.mxu0 0.0
    %2023 = vmatpush1.msra.mxu0 0.0
    %2024 = vmatprep.mubr.f32.mxu0 0.0
    %2025 = vmatmul.mubr.f32.gmra.mrb[0].mxu0 %v1949
    %v2026 = vpop.f32.mrb[0].mxu0
    %v2027 = vadd.f32 0.0, %v2026
    %v2028 = vpop.f32.mrb[0].mxu0
    %v2029 = vadd.f32 0.0, %v2028
    %2030 = vmatprep.mubr.f32.mxu0 0.0
    %2031 = vmatmul.mubr.f32.gmra.mrb[0].mxu0 %v1952
    %v2032 = vpop.f32.mrb[0].mxu0
    %v2033 = vadd.f32 0.0, %v2032
    %v2034 = vpop.f32.mrb[0].mxu0
    %v2035 = vadd.f32 0.0, %v2034
    %2036 = vmatprep.mubr.f32.mxu0 0.0
    %2037 = vmatmul.mubr.f32.gmra.mrb[0].mxu0 %v1955
    %v2038 = vpop.f32.mrb[0].mxu0
    %v2039 = vadd.f32 0.0, %v2038
    %v2040 = vpop.f32.mrb[0].mxu0
    %v2041 = vadd.f32 0.0, %v2040
    %2042 = vmatprep.mubr.f32.mxu0 0.0
    %2043 = vmatmul.mubr.f32.gmra.mrb[0].mxu0 %v1958
    %v2044 = vpop.f32.mrb[0].mxu0
    %v2045 = vadd.f32 0.0, %v2044
    %v2046 = vpop.f32.mrb[0].mxu0
    %v2047 = vadd.f32 0.0, %v2046
    %2048 = vdwg.mxu0
    %v2050 = vcombine.high %v1603, %v1603
    %vm2051 = vcmask 31744
    %v2052 = vsel %vm2051, %v222, 0
    %v2054 = vsel %vm2051, %v227, 0
    %v2056 = vsel %vm2051, %v232, 0
    %v2058 = vsel %vm2051, %v237, 0
    %v2060 = vsel %vm344, %v1603, 0
    %v2062 = vsel %vm344, %v2050, 0
    %2064 = vmatprep.subr.mxu0 %v2062
    %2065 = vmatpush1.msra.mxu0 %v2060
    %2066 = vmatprep.subr.mxu0 0.0
    %2067 = vmatpush1.msra.mxu0 0.0
    %2068 = vmatprep.subr.mxu0 0.0
    %2069 = vmatpush1.msra.mxu0 0.0
    %2070 = vmatprep.subr.mxu0 0.0
    %2071 = vmatpush1.msra.mxu0 0.0
    %2072 = vmatprep.subr.mxu0 0.0
    %2073 = vmatpush1.msra.mxu0 0.0
    %2074 = vmatprep.subr.mxu0 0.0
    %2075 = vmatpush1.msra.mxu0 0.0
    %2076 = vmatprep.subr.mxu0 0.0
    %2077 = vmatpush1.msra.mxu0 0.0
    %2078 = vmatprep.subr.mxu0 0.0
    %2079 = vmatpush1.msra.mxu0 0.0
    %2080 = vmatprep.subr.mxu0 0.0
    %2081 = vmatpush1.msra.mxu0 0.0
    %2082 = vmatprep.subr.mxu0 0.0
    %2083 = vmatpush1.msra.mxu0 0.0
    %2084 = vmatprep.subr.mxu0 0.0
    %2085 = vmatpush1.msra.mxu0 0.0
    %2086 = vmatprep.subr.mxu0 0.0
    %2087 = vmatpush1.msra.mxu0 0.0
    %2088 = vmatprep.subr.mxu0 0.0
    %2089 = vmatpush1.msra.mxu0 0.0
    %2090 = vmatprep.subr.mxu0 0.0
    %2091 = vmatpush1.msra.mxu0 0.0
    %2092 = vmatprep.subr.mxu0 0.0
    %2093 = vmatpush1.msra.mxu0 0.0
    %2094 = vmatprep.subr.mxu0 0.0
    %2095 = vmatpush1.msra.mxu0 0.0
    %2096 = vmatprep.subr.mxu0 0.0
    %2097 = vmatpush1.msra.mxu0 0.0
    %2098 = vmatprep.subr.mxu0 0.0
    %2099 = vmatpush1.msra.mxu0 0.0
    %2100 = vmatprep.subr.mxu0 0.0
    %2101 = vmatpush1.msra.mxu0 0.0
    %2102 = vmatprep.subr.mxu0 0.0
    %2103 = vmatpush1.msra.mxu0 0.0
    %2104 = vmatprep.subr.mxu0 0.0
    %2105 = vmatpush1.msra.mxu0 0.0
    %2106 = vmatprep.subr.mxu0 0.0
    %2107 = vmatpush1.msra.mxu0 0.0
    %2108 = vmatprep.subr.mxu0 0.0
    %2109 = vmatpush1.msra.mxu0 0.0
    %2110 = vmatprep.subr.mxu0 0.0
    %2111 = vmatpush1.msra.mxu0 0.0
    %2112 = vmatprep.subr.mxu0 0.0
    %2113 = vmatpush1.msra.mxu0 0.0
    %2114 = vmatprep.subr.mxu0 0.0
    %2115 = vmatpush1.msra.mxu0 0.0
    %2116 = vmatprep.subr.mxu0 0.0
    %2117 = vmatpush1.msra.mxu0 0.0
    %2118 = vmatprep.subr.mxu0 0.0
    %2119 = vmatpush1.msra.mxu0 0.0
    %2120 = vmatprep.subr.mxu0 0.0
    %2121 = vmatpush1.msra.mxu0 0.0
    %2122 = vmatprep.subr.mxu0 0.0
    %2123 = vmatpush1.msra.mxu0 0.0
    %2124 = vmatprep.subr.mxu0 0.0
    %2125 = vmatpush1.msra.mxu0 0.0
    %2126 = vmatprep.subr.mxu0 0.0
    %2127 = vmatpush1.msra.mxu0 0.0
    %2128 = vmatprep.mubr.f32.mxu0 0.0
    %2129 = vmatmul.mubr.f32.gmra.mrb[0].mxu0 %v2052
    %v2130 = vpop.f32.mrb[0].mxu0
    %v2131 = vadd.f32 %v1691, %v2130
    %v2132 = vpop.f32.mrb[0].mxu0
    %v2133 = vadd.f32 %v1693, %v2132
    %2134 = vmatprep.mubr.f32.mxu0 0.0
    %2135 = vmatmul.mubr.f32.gmra.mrb[0].mxu0 %v2054
    %v2136 = vpop.f32.mrb[0].mxu0
    %v2137 = vadd.f32 %v1697, %v2136
    %v2138 = vpop.f32.mrb[0].mxu0
    %v2139 = vadd.f32 %v1699, %v2138
    %2140 = vmatprep.mubr.f32.mxu0 0.0
    %2141 = vmatmul.mubr.f32.gmra.mrb[0].mxu0 %v2056
    %v2142 = vpop.f32.mrb[0].mxu0
    %v2143 = vadd.f32 %v1703, %v2142
    %v2144 = vpop.f32.mrb[0].mxu0
    %v2145 = vadd.f32 %v1705, %v2144
    %2146 = vmatprep.mubr.f32.mxu0 0.0
    %2147 = vmatmul.mubr.f32.gmra.mrb[0].mxu0 %v2058
    %v2148 = vpop.f32.mrb[0].mxu0
    %v2149 = vadd.f32 %v1709, %v2148
    %v2150 = vpop.f32.mrb[0].mxu0
    %v2151 = vadd.f32 %v1711, %v2150
    %2152 = vdwg.mxu0
    %v2154 = vcombine.high %v1714, %v1714
    %v2155 = vsel %vm2051, %v242, 0
    %v2157 = vsel %vm2051, %v247, 0
    %v2159 = vsel %vm2051, %v252, 0
    %v2161 = vsel %vm2051, %v257, 0
    %v2163 = vsel %vm344, %v1714, 0
    %v2165 = vsel %vm344, %v2154, 0
    %2167 = vmatprep.subr.mxu0 %v2165
    %2168 = vmatpush1.msra.mxu0 %v2163
    %2169 = vmatprep.subr.mxu0 0.0
    %2170 = vmatpush1.msra.mxu0 0.0
    %2171 = vmatprep.subr.mxu0 0.0
    %2172 = vmatpush1.msra.mxu0 0.0
    %2173 = vmatprep.subr.mxu0 0.0
    %2174 = vmatpush1.msra.mxu0 0.0
    %2175 = vmatprep.subr.mxu0 0.0
    %2176 = vmatpush1.msra.mxu0 0.0
    %2177 = vmatprep.subr.mxu0 0.0
    %2178 = vmatpush1.msra.mxu0 0.0
    %2179 = vmatprep.subr.mxu0 0.0
    %2180 = vmatpush1.msra.mxu0 0.0
    %2181 = vmatprep.subr.mxu0 0.0
    %2182 = vmatpush1.msra.mxu0 0.0
    %2183 = vmatprep.subr.mxu0 0.0
    %2184 = vmatpush1.msra.mxu0 0.0
    %2185 = vmatprep.subr.mxu0 0.0
    %2186 = vmatpush1.msra.mxu0 0.0
    %2187 = vmatprep.subr.mxu0 0.0
    %2188 = vmatpush1.msra.mxu0 0.0
    %2189 = vmatprep.subr.mxu0 0.0
    %2190 = vmatpush1.msra.mxu0 0.0
    %2191 = vmatprep.subr.mxu0 0.0
    %2192 = vmatpush1.msra.mxu0 0.0
    %2193 = vmatprep.subr.mxu0 0.0
    %2194 = vmatpush1.msra.mxu0 0.0
    %2195 = vmatprep.subr.mxu0 0.0
    %2196 = vmatpush1.msra.mxu0 0.0
    %2197 = vmatprep.subr.mxu0 0.0
    %2198 = vmatpush1.msra.mxu0 0.0
    %2199 = vmatprep.subr.mxu0 0.0
    %2200 = vmatpush1.msra.mxu0 0.0
    %2201 = vmatprep.subr.mxu0 0.0
    %2202 = vmatpush1.msra.mxu0 0.0
    %2203 = vmatprep.subr.mxu0 0.0
    %2204 = vmatpush1.msra.mxu0 0.0
    %2205 = vmatprep.subr.mxu0 0.0
    %2206 = vmatpush1.msra.mxu0 0.0
    %2207 = vmatprep.subr.mxu0 0.0
    %2208 = vmatpush1.msra.mxu0 0.0
    %2209 = vmatprep.subr.mxu0 0.0
    %2210 = vmatpush1.msra.mxu0 0.0
    %2211 = vmatprep.subr.mxu0 0.0
    %2212 = vmatpush1.msra.mxu0 0.0
    %2213 = vmatprep.subr.mxu0 0.0
    %2214 = vmatpush1.msra.mxu0 0.0
    %2215 = vmatprep.subr.mxu0 0.0
    %2216 = vmatpush1.msra.mxu0 0.0
    %2217 = vmatprep.subr.mxu0 0.0
    %2218 = vmatpush1.msra.mxu0 0.0
    %2219 = vmatprep.subr.mxu0 0.0
    %2220 = vmatpush1.msra.mxu0 0.0
    %2221 = vmatprep.subr.mxu0 0.0
    %2222 = vmatpush1.msra.mxu0 0.0
    %2223 = vmatprep.subr.mxu0 0.0
    %2224 = vmatpush1.msra.mxu0 0.0
    %2225 = vmatprep.subr.mxu0 0.0
    %2226 = vmatpush1.msra.mxu0 0.0
    %2227 = vmatprep.subr.mxu0 0.0
    %2228 = vmatpush1.msra.mxu0 0.0
    %2229 = vmatprep.subr.mxu0 0.0
    %2230 = vmatpush1.msra.mxu0 0.0
    %2231 = vmatprep.mubr.f32.mxu0 0.0
    %2232 = vmatmul.mubr.f32.gmra.mrb[0].mxu0 %v2155
    %v2233 = vpop.f32.mrb[0].mxu0
    %v2234 = vadd.f32 %v1803, %v2233
    %v2235 = vpop.f32.mrb[0].mxu0
    %v2236 = vadd.f32 %v1805, %v2235
    %2237 = vmatprep.mubr.f32.mxu0 0.0
    %2238 = vmatmul.mubr.f32.gmra.mrb[0].mxu0 %v2157
    %v2239 = vpop.f32.mrb[0].mxu0
    %v2240 = vadd.f32 %v1809, %v2239
    %v2241 = vpop.f32.mrb[0].mxu0
    %v2242 = vadd.f32 %v1811, %v2241
    %2243 = vmatprep.mubr.f32.mxu0 0.0
    %2244 = vmatmul.mubr.f32.gmra.mrb[0].mxu0 %v2159
    %v2245 = vpop.f32.mrb[0].mxu0
    %v2246 = vadd.f32 %v1815, %v2245
    %v2247 = vpop.f32.mrb[0].mxu0
    %v2248 = vadd.f32 %v1817, %v2247
    %2249 = vmatprep.mubr.f32.mxu0 0.0
    %2250 = vmatmul.mubr.f32.gmra.mrb[0].mxu0 %v2161
    %v2251 = vpop.f32.mrb[0].mxu0
    %v2252 = vadd.f32 %v1821, %v2251
    %v2253 = vpop.f32.mrb[0].mxu0
    %v2254 = vadd.f32 %v1823, %v2253
    %2255 = vdwg.mxu0
    %v2257 = vcombine.high %v1826, %v1826
    %v2258 = vsel %vm2051, %v262, 0
    %v2260 = vsel %vm2051, %v267, 0
    %v2262 = vsel %vm2051, %v272, 0
    %v2264 = vsel %vm2051, %v277, 0
    %v2266 = vsel %vm344, %v1826, 0
    %v2268 = vsel %vm344, %v2257, 0
    %2270 = vmatprep.subr.mxu0 %v2268
    %2271 = vmatpush1.msra.mxu0 %v2266
    %2272 = vmatprep.subr.mxu0 0.0
    %2273 = vmatpush1.msra.mxu0 0.0
    %2274 = vmatprep.subr.mxu0 0.0
    %2275 = vmatpush1.msra.mxu0 0.0
    %2276 = vmatprep.subr.mxu0 0.0
    %2277 = vmatpush1.msra.mxu0 0.0
    %2278 = vmatprep.subr.mxu0 0.0
    %2279 = vmatpush1.msra.mxu0 0.0
    %2280 = vmatprep.subr.mxu0 0.0
    %2281 = vmatpush1.msra.mxu0 0.0
    %2282 = vmatprep.subr.mxu0 0.0
    %2283 = vmatpush1.msra.mxu0 0.0
    %2284 = vmatprep.subr.mxu0 0.0
    %2285 = vmatpush1.msra.mxu0 0.0
    %2286 = vmatprep.subr.mxu0 0.0
    %2287 = vmatpush1.msra.mxu0 0.0
    %2288 = vmatprep.subr.mxu0 0.0
    %2289 = vmatpush1.msra.mxu0 0.0
    %2290 = vmatprep.subr.mxu0 0.0
    %2291 = vmatpush1.msra.mxu0 0.0
    %2292 = vmatprep.subr.mxu0 0.0
    %2293 = vmatpush1.msra.mxu0 0.0
    %2294 = vmatprep.subr.mxu0 0.0
    %2295 = vmatpush1.msra.mxu0 0.0
    %2296 = vmatprep.subr.mxu0 0.0
    %2297 = vmatpush1.msra.mxu0 0.0
    %2298 = vmatprep.subr.mxu0 0.0
    %2299 = vmatpush1.msra.mxu0 0.0
    %2300 = vmatprep.subr.mxu0 0.0
    %2301 = vmatpush1.msra.mxu0 0.0
    %2302 = vmatprep.subr.mxu0 0.0
    %2303 = vmatpush1.msra.mxu0 0.0
    %2304 = vmatprep.subr.mxu0 0.0
    %2305 = vmatpush1.msra.mxu0 0.0
    %2306 = vmatprep.subr.mxu0 0.0
    %2307 = vmatpush1.msra.mxu0 0.0
    %2308 = vmatprep.subr.mxu0 0.0
    %2309 = vmatpush1.msra.mxu0 0.0
    %2310 = vmatprep.subr.mxu0 0.0
    %2311 = vmatpush1.msra.mxu0 0.0
    %2312 = vmatprep.subr.mxu0 0.0
    %2313 = vmatpush1.msra.mxu0 0.0
    %2314 = vmatprep.subr.mxu0 0.0
    %2315 = vmatpush1.msra.mxu0 0.0
    %2316 = vmatprep.subr.mxu0 0.0
    %2317 = vmatpush1.msra.mxu0 0.0
    %2318 = vmatprep.subr.mxu0 0.0
    %2319 = vmatpush1.msra.mxu0 0.0
    %2320 = vmatprep.subr.mxu0 0.0
    %2321 = vmatpush1.msra.mxu0 0.0
    %2322 = vmatprep.subr.mxu0 0.0
    %2323 = vmatpush1.msra.mxu0 0.0
    %2324 = vmatprep.subr.mxu0 0.0
    %2325 = vmatpush1.msra.mxu0 0.0
    %2326 = vmatprep.subr.mxu0 0.0
    %2327 = vmatpush1.msra.mxu0 0.0
    %2328 = vmatprep.subr.mxu0 0.0
    %2329 = vmatpush1.msra.mxu0 0.0
    %2330 = vmatprep.subr.mxu0 0.0
    %2331 = vmatpush1.msra.mxu0 0.0
    %2332 = vmatprep.subr.mxu0 0.0
    %2333 = vmatpush1.msra.mxu0 0.0
    %2334 = vmatprep.mubr.f32.mxu0 0.0
    %2335 = vmatmul.mubr.f32.gmra.mrb[0].mxu0 %v2258
    %v2336 = vpop.f32.mrb[0].mxu0
    %v2337 = vadd.f32 %v1915, %v2336
    %v2338 = vpop.f32.mrb[0].mxu0
    %v2339 = vadd.f32 %v1917, %v2338
    %2340 = vmatprep.mubr.f32.mxu0 0.0
    %2341 = vmatmul.mubr.f32.gmra.mrb[0].mxu0 %v2260
    %v2342 = vpop.f32.mrb[0].mxu0
    %v2343 = vadd.f32 %v1921, %v2342
    %v2344 = vpop.f32.mrb[0].mxu0
    %v2345 = vadd.f32 %v1923, %v2344
    %2346 = vmatprep.mubr.f32.mxu0 0.0
    %2347 = vmatmul.mubr.f32.gmra.mrb[0].mxu0 %v2262
    %v2348 = vpop.f32.mrb[0].mxu0
    %v2349 = vadd.f32 %v1927, %v2348
    %v2350 = vpop.f32.mrb[0].mxu0
    %v2351 = vadd.f32 %v1929, %v2350
    %2352 = vmatprep.mubr.f32.mxu0 0.0
    %2353 = vmatmul.mubr.f32.gmra.mrb[0].mxu0 %v2264
    %v2354 = vpop.f32.mrb[0].mxu0
    %v2355 = vadd.f32 %v1933, %v2354
    %v2356 = vpop.f32.mrb[0].mxu0
    %v2357 = vadd.f32 %v1935, %v2356
    %2358 = vdwg.mxu0
    %v2360 = vcombine.high %v1938, %v1938
    %v2361 = vsel %vm2051, %v282, 0
    %v2363 = vsel %vm2051, %v287, 0
    %v2365 = vsel %vm2051, %v292, 0
    %v2367 = vsel %vm2051, %v297, 0
    %v2369 = vsel %vm344, %v1938, 0
    %v2371 = vsel %vm344, %v2360, 0
    %2373 = vmatprep.subr.mxu0 %v2371
    %2374 = vmatpush1.msra.mxu0 %v2369
    %2375 = vmatprep.subr.mxu0 0.0
    %2376 = vmatpush1.msra.mxu0 0.0
    %2377 = vmatprep.subr.mxu0 0.0
    %2378 = vmatpush1.msra.mxu0 0.0
    %2379 = vmatprep.subr.mxu0 0.0
    %2380 = vmatpush1.msra.mxu0 0.0
    %2381 = vmatprep.subr.mxu0 0.0
    %2382 = vmatpush1.msra.mxu0 0.0
    %2383 = vmatprep.subr.mxu0 0.0
    %2384 = vmatpush1.msra.mxu0 0.0
    %2385 = vmatprep.subr.mxu0 0.0
    %2386 = vmatpush1.msra.mxu0 0.0
    %2387 = vmatprep.subr.mxu0 0.0
    %2388 = vmatpush1.msra.mxu0 0.0
    %2389 = vmatprep.subr.mxu0 0.0
    %2390 = vmatpush1.msra.mxu0 0.0
    %2391 = vmatprep.subr.mxu0 0.0
    %2392 = vmatpush1.msra.mxu0 0.0
    %2393 = vmatprep.subr.mxu0 0.0
    %2394 = vmatpush1.msra.mxu0 0.0
    %2395 = vmatprep.subr.mxu0 0.0
    %2396 = vmatpush1.msra.mxu0 0.0
    %2397 = vmatprep.subr.mxu0 0.0
    %2398 = vmatpush1.msra.mxu0 0.0
    %2399 = vmatprep.subr.mxu0 0.0
    %2400 = vmatpush1.msra.mxu0 0.0
    %2401 = vmatprep.subr.mxu0 0.0
    %2402 = vmatpush1.msra.mxu0 0.0
    %2403 = vmatprep.subr.mxu0 0.0
    %2404 = vmatpush1.msra.mxu0 0.0
    %2405 = vmatprep.subr.mxu0 0.0
    %2406 = vmatpush1.msra.mxu0 0.0
    %2407 = vmatprep.subr.mxu0 0.0
    %2408 = vmatpush1.msra.mxu0 0.0
    %2409 = vmatprep.subr.mxu0 0.0
    %2410 = vmatpush1.msra.mxu0 0.0
    %2411 = vmatprep.subr.mxu0 0.0
    %2412 = vmatpush1.msra.mxu0 0.0
    %2413 = vmatprep.subr.mxu0 0.0
    %2414 = vmatpush1.msra.mxu0 0.0
    %2415 = vmatprep.subr.mxu0 0.0
    %2416 = vmatpush1.msra.mxu0 0.0
    %2417 = vmatprep.subr.mxu0 0.0
    %2418 = vmatpush1.msra.mxu0 0.0
    %2419 = vmatprep.subr.mxu0 0.0
    %2420 = vmatpush1.msra.mxu0 0.0
    %2421 = vmatprep.subr.mxu0 0.0
    %2422 = vmatpush1.msra.mxu0 0.0
    %2423 = vmatprep.subr.mxu0 0.0
    %2424 = vmatpush1.msra.mxu0 0.0
    %2425 = vmatprep.subr.mxu0 0.0
    %2426 = vmatpush1.msra.mxu0 0.0
    %2427 = vmatprep.subr.mxu0 0.0
    %2428 = vmatpush1.msra.mxu0 0.0
    %2429 = vmatprep.subr.mxu0 0.0
    %2430 = vmatpush1.msra.mxu0 0.0
    %2431 = vmatprep.subr.mxu0 0.0
    %2432 = vmatpush1.msra.mxu0 0.0
    %2433 = vmatprep.subr.mxu0 0.0
    %2434 = vmatpush1.msra.mxu0 0.0
    %2435 = vmatprep.subr.mxu0 0.0
    %2436 = vmatpush1.msra.mxu0 0.0
    %2437 = vmatprep.mubr.f32.mxu0 0.0
    %2438 = vmatmul.mubr.f32.gmra.mrb[0].mxu0 %v2361
    %v2439 = vpop.f32.mrb[0].mxu0
    %v2440 = vadd.f32 %v2027, %v2439
    %v2441 = vpop.f32.mrb[0].mxu0
    %v2442 = vadd.f32 %v2029, %v2441
    %2443 = vmatprep.mubr.f32.mxu0 0.0
    %2444 = vmatmul.mubr.f32.gmra.mrb[0].mxu0 %v2363
    %v2445 = vpop.f32.mrb[0].mxu0
    %v2446 = vadd.f32 %v2033, %v2445
    %v2447 = vpop.f32.mrb[0].mxu0
    %v2448 = vadd.f32 %v2035, %v2447
    %2449 = vmatprep.mubr.f32.mxu0 0.0
    %2450 = vmatmul.mubr.f32.gmra.mrb[0].mxu0 %v2365
    %v2451 = vpop.f32.mrb[0].mxu0
    %v2452 = vadd.f32 %v2039, %v2451
    %v2453 = vpop.f32.mrb[0].mxu0
    %v2454 = vadd.f32 %v2041, %v2453
    %2455 = vmatprep.mubr.f32.mxu0 0.0
    %2456 = vmatmul.mubr.f32.gmra.mrb[0].mxu0 %v2367
    %v2457 = vpop.f32.mrb[0].mxu0
    %v2458 = vadd.f32 %v2045, %v2457
    %v2459 = vpop.f32.mrb[0].mxu0
    %v2460 = vadd.f32 %v2047, %v2459
    %2461 = vdwg.mxu0
    %v2462 = vadd.f32 %v2131, %v2234
    %v2463 = vadd.f32 %v2133, %v2236
    %v2464 = vadd.f32 %v2137, %v2240
    %v2465 = vadd.f32 %v2139, %v2242
    %v2466 = vadd.f32 %v2143, %v2246
    %v2467 = vadd.f32 %v2145, %v2248
    %v2468 = vadd.f32 %v2149, %v2252
    %v2469 = vadd.f32 %v2151, %v2254
    %v2470 = vadd.f32 %v2337, %v2440
    %v2471 = vadd.f32 %v2339, %v2442
    %v2472 = vadd.f32 %v2343, %v2446
    %v2473 = vadd.f32 %v2345, %v2448
    %v2474 = vadd.f32 %v2349, %v2452
    %v2475 = vadd.f32 %v2351, %v2454
    %v2476 = vadd.f32 %v2355, %v2458
    %v2477 = vadd.f32 %v2357, %v2460
    %v2478 = vadd.f32 %v2462, %v2470
    %v2479 = vadd.f32 %v2463, %v2471
    %v2480 = vadd.f32 %v2464, %v2472
    %v2481 = vadd.f32 %v2465, %v2473
    %v2482 = vadd.f32 %v2466, %v2474
    %v2483 = vadd.f32 %v2467, %v2475
    %v2484 = vadd.f32 %v2468, %v2476
    %v2485 = vadd.f32 %v2469, %v2477
    %v2486 = vld [vmem:[%s9] sm:$0xff]
    %v2487 = vld [vmem:[%s9 + $0x8] sm:$0xff]
    %v2488 = vld [vmem:[%s9 + $0x10] sm:$0xff]
    %v2489 = vld [vmem:[%s9 + $0x18] sm:$0xff]
    %v2490 = vmul.f32 %v2478, %v50
    %v2491 = vmul.f32 %v2479, %v51
    %v2492 = vmul.f32 %v2480, %v52
    %v2493 = vmul.f32 %v2481, %v53
    %v2494 = vmul.f32 %v2482, %v54
    %v2495 = vmul.f32 %v2483, %v55
    %v2496 = vmul.f32 %v2484, %v56
    %v2497 = vmul.f32 %v2485, %v57
    %2498 = vmatprep.subr.mxu0 0.0
    %2499 = vmatpush1.msra.mxu0 %v58
    %2500 = vmatprep.subr.mxu0 0.0
    %2501 = vmatpush1.msra.mxu0 %v59
    %2502 = vmatprep.subr.mxu0 0.0
    %2503 = vmatpush1.msra.mxu0 %v60
    %2504 = vmatprep.subr.mxu0 0.0
    %2505 = vmatpush1.msra.mxu0 %v61
    %2506 = vmatprep.subr.mxu0 0.0
    %2507 = vmatpush1.msra.mxu0 %v62
    %2508 = vmatprep.subr.mxu0 0.0
    %2509 = vmatpush1.msra.mxu0 %v63
    %2510 = vmatprep.subr.mxu0 0.0
    %2511 = vmatpush1.msra.mxu0 %v64
    %2512 = vmatprep.subr.mxu0 0.0
    %2513 = vmatpush1.msra.mxu0 %v65
    %2514 = vmatprep.subr.mxu0 0.0
    %2515 = vmatpush1.msra.mxu0 %v66
    %2516 = vmatprep.subr.mxu0 0.0
    %2517 = vmatpush1.msra.mxu0 %v67
    %2518 = vmatprep.subr.mxu0 0.0
    %2519 = vmatpush1.msra.mxu0 %v68
    %2520 = vmatprep.subr.mxu0 0.0
    %2521 = vmatpush1.msra.mxu0 %v69
    %2522 = vmatprep.subr.mxu0 0.0
    %2523 = vmatpush1.msra.mxu0 %v70
    %2524 = vmatprep.subr.mxu0 0.0
    %2525 = vmatpush1.msra.mxu0 %v71
    %2526 = vmatprep.subr.mxu0 0.0
    %2527 = vmatpush1.msra.mxu0 %v72
    %2528 = vmatprep.subr.mxu0 0.0
    %2529 = vmatpush1.msra.mxu0 %v73
    %2530 = vmatprep.subr.mxu0 0.0
    %2531 = vmatpush1.msra.mxu0 %v74
    %2532 = vmatprep.subr.mxu0 0.0
    %2533 = vmatpush1.msra.mxu0 %v75
    %2534 = vmatprep.subr.mxu0 0.0
    %2535 = vmatpush1.msra.mxu0 %v76
    %2536 = vmatprep.subr.mxu0 0.0
    %2537 = vmatpush1.msra.mxu0 %v77
    %2538 = vmatprep.subr.mxu0 0.0
    %2539 = vmatpush1.msra.mxu0 %v78
    %2540 = vmatprep.subr.mxu0 0.0
    %2541 = vmatpush1.msra.mxu0 %v79
    %2542 = vmatprep.subr.mxu0 0.0
    %2543 = vmatpush1.msra.mxu0 %v80
    %2544 = vmatprep.subr.mxu0 0.0
    %2545 = vmatpush1.msra.mxu0 %v81
    %2546 = vmatprep.subr.mxu0 0.0
    %2547 = vmatpush1.msra.mxu0 %v82
    %2548 = vmatprep.subr.mxu0 0.0
    %2549 = vmatpush1.msra.mxu0 %v83
    %2550 = vmatprep.subr.mxu0 0.0
    %2551 = vmatpush1.msra.mxu0 %v84
    %2552 = vmatprep.subr.mxu0 0.0
    %2553 = vmatpush1.msra.mxu0 %v85
    %2554 = vmatprep.subr.mxu0 0.0
    %2555 = vmatpush1.msra.mxu0 %v86
    %2556 = vmatprep.subr.mxu0 0.0
    %2557 = vmatpush1.msra.mxu0 %v87
    %2558 = vmatprep.subr.mxu0 0.0
    %2559 = vmatpush1.msra.mxu0 %v88
    %2560 = vmatprep.subr.mxu0 0.0
    %2561 = vmatpush1.msra.mxu0 %v89
    %2562 = vmatprep.mubr.f32.mxu0 %v2491
    %2563 = vmatmul.mubr.f32.gmra.mrb[0].mxu0 %v2490
    %v2564 = vpop.f32.mrb[0].mxu0
    %v2565 = vadd.f32 %v2486, %v2564
    %v2566 = vpop.f32.mrb[0].mxu0
    %2567 = vmatprep.mubr.f32.mxu0 %v2493
    %2568 = vmatmul.mubr.f32.gmra.mrb[0].mxu0 %v2492
    %v2569 = vpop.f32.mrb[0].mxu0
    %v2570 = vadd.f32 %v2487, %v2569
    %v2571 = vpop.f32.mrb[0].mxu0
    %2572 = vmatprep.mubr.f32.mxu0 %v2495
    %2573 = vmatmul.mubr.f32.gmra.mrb[0].mxu0 %v2494
    %v2574 = vpop.f32.mrb[0].mxu0
    %v2575 = vadd.f32 %v2488, %v2574
    %v2576 = vpop.f32.mrb[0].mxu0
    %2577 = vmatprep.mubr.f32.mxu0 %v2497
    %2578 = vmatmul.mubr.f32.gmra.mrb[0].mxu0 %v2496
    %v2579 = vpop.f32.mrb[0].mxu0
    %v2580 = vadd.f32 %v2489, %v2579
    %v2581 = vpop.f32.mrb[0].mxu0
    %2582 = vdwg.mxu0
    %v2583 = vtanh.pop %v2565
    %v2584 = vtanh.pop %v2570
    %v2585 = vtanh.pop %v2575
    %v2586 = vtanh.pop %v2580
    %v2587 = vmul.f32 %v1447, %v46
    %v2588 = vmul.f32 %v1449, %v47
    %v2589 = vmul.f32 %v1451, %v48
    %v2590 = vmul.f32 %v1453, %v49
    %v2591 = vsub.f32 1.0, %v1447
    %v2592 = vsub.f32 1.0, %v1449
    %v2593 = vsub.f32 1.0, %v1451
    %v2594 = vsub.f32 1.0, %v1453
    %v2595 = vmul.f32 %v2591, %v2583
    %v2596 = vmul.f32 %v2592, %v2584
    %v2597 = vmul.f32 %v2593, %v2585
    %v2598 = vmul.f32 %v2594, %v2586
    %v2599 = vadd.f32 %v2587, %v2595
    %v2600 = vadd.f32 %v2588, %v2596
    %v2601 = vadd.f32 %v2589, %v2597
    %v2602 = vadd.f32 %v2590, %v2598
    %2603 = vst.msk [vmem:[#allocation2] sm:$0xff] %vm106, %v2599
    %2604 = vst.msk [vmem:[#allocation2 + $0x8] sm:$0xff] %vm106, %v2600
    %2605 = vst.msk [vmem:[#allocation2 + $0x10] sm:$0xff] %vm106, %v2601
    %2606 = vst.msk [vmem:[#allocation2 + $0x18] sm:$0xff] %vm106, %v2602
    // Predicated region
    $region50: #{tpu_custom_call.1} parent=1 // pred_check
      _
    $region51: #{tpu_custom_call.1} parent=1 // pred_check_branch
      %2608 = sbr.rel (0) target = $region53
    $region52: #{tpu_custom_call.1} parent=1 // pred_region
      %s2610 = ssub.s32 512, 512
      %2611 = vsyncadd [#allocation3], %s2610
      %s2612 = sshll.u32 [#allocation2], 4
      %s2613 = int_to_ptr.vmem [resolvable:$true] %s2612
      %2618 = dma.vmem_to_hbm [thread:$0]  %s2613, 512, %s12, [#allocation3], 128, 128, 8
    $region53: #{tpu_custom_call.1} parent=1 // pred_fallthru
      _
    // Predicated region
    $region54: #{tpu_custom_call.1} parent=1 // pred_check
      _
    $region55: #{tpu_custom_call.1} parent=1 // pred_check_branch
      %2620 = sbr.rel (0) target = $region57
    $region56: #{tpu_custom_call.1} parent=1 // pred_region
      %2621 = dma.done [#allocation3], 512
    $region57: #{tpu_custom_call.1} parent=1 // pred_fallthru
      _
    %2622 = vsyncpa [#allocation3], 1

</llo_original>
